<compile_context>
chip_gen: v7x
topology: tpu7x:2x2x1
jax: 0.10.0
libtpu: 0.0.40
codegen_flags: <defaults>
</compile_context>

<pallas_src>
import functools

import jax
import jax.numpy as jnp
from jax.experimental import pallas as pl
from jax.experimental.pallas import tpu as pltpu

BN_EPS = 1e-5  # PyTorch BatchNorm2d default


def _round_up(x, m):
    return (x + m - 1) // m * m


# --------------------------------------------------------------------------
# Kernel 1: per-image conv (9 shifted matmuls, bf16 operands, f32 accumulate)
#           + masked per-channel partial BN statistics.
# --------------------------------------------------------------------------
def _conv_stats_kernel(x_ref, w_ref, mask_ref, conv_ref, stats_ref, *, KH, KW, Wp):
    # x_ref:    (1, Cin, Fp)        compute dtype (bf16), flattened padded image
    # w_ref:    (KH*KW, Cout_p, Cin) compute dtype
    # mask_ref: (1, L_out)          f32 validity mask (1 = real output position)
    # conv_ref: (1, Cout_p, L_out)  f32 conv output (lane-dense)
    # stats_ref:(1, Cout_p, 2)      f32 [:, 0]=sum, [:, 1]=sum of squares (masked)
    cout_p = conv_ref.shape[1]
    l_out = conv_ref.shape[2]

    x = x_ref[0]                                    # (Cin, Fp)
    acc = jnp.zeros((cout_p, l_out), jnp.float32)
    for kh in range(KH):
        for kw in range(KW):
            t = kh * KW + kw
            shift = kh * Wp + kw                    # static offsets
            x_s = x[:, shift:shift + l_out]         # (Cin, L_out)
            acc = acc + jnp.dot(w_ref[t], x_s,
                                preferred_element_type=jnp.float32)
    conv_ref[0] = acc

    m = mask_ref[...]                               # (1, L_out) broadcast
    am = acc * m
    stats_ref[0, :, 0:1] = jnp.sum(am, axis=1, keepdims=True)
    stats_ref[0, :, 1:2] = jnp.sum(am * acc, axis=1, keepdims=True)


# --------------------------------------------------------------------------
# Kernel 2: fused BatchNorm affine (precomputed scale/shift) + PReLU.
# --------------------------------------------------------------------------
def _bn_prelu_kernel(conv_ref, params_ref, out_ref):
    # conv_ref:   (1, Cout_p, L_out) f32
    # params_ref: (Cout_p, 4) f32: col0=scale, col1=shift, col2=alpha
    # out_ref:    (1, Cout_p, L_out)
    c = conv_ref[0]
    scale = params_ref[:, 0:1]
    shift = params_ref[:, 1:2]
    alpha = params_ref[:, 2:3]
    y = c * scale + shift
    out_ref[0] = jnp.where(y >= 0.0, y, alpha * y).astype(out_ref.dtype)


@functools.partial(jax.jit,
                   static_argnames=("kernel_size", "padding", "compute_dtype"))
def conv_block_forward(x, weight, gamma, beta, alpha, *,
                       kernel_size=3, padding=1, compute_dtype=jnp.bfloat16):
    """Fused Conv2d(no bias, stride 1) + BatchNorm2d(train) + PReLU.

    x:      (N, Cin, H, W)       float32 (NCHW, PyTorch convention)
    weight: (Cout, Cin, KH, KW)  float32 (OIHW)
    gamma, beta, alpha: (Cout,)
    returns (N, Cout, H, W) float32
    """
    N, Cin, H, W = x.shape
    Cout = weight.shape[0]
    KH = KW = kernel_size
    p = padding
    Hp, Wp = H + 2 * p, W + 2 * p
    KK = KH * KW

    Cout_p = _round_up(Cout, 8)                    # sublane-align output channels
    L_out = _round_up(H * Wp, 128)                 # lane-dense per-image output width
    Fp = _round_up(L_out + (KH - 1) * Wp + (KW - 1), 128)  # padded input width
    M_valid = N * H * W

    # ---- glue: zero-pad + flatten spatial (only ~1.3x input, no 9x im2col) ----
    x_pad = jnp.pad(x, ((0, 0), (0, 0), (p, p), (p, p)))      # (N, Cin, Hp, Wp)
    x_flat = x_pad.reshape(N, Cin, Hp * Wp)
    x_flat = jnp.pad(x_flat, ((0, 0), (0, 0), (0, Fp - Hp * Wp)))
    x_flat = x_flat.astype(compute_dtype)

    # weight (Cout, Cin, KH, KW) -> (KK, Cout_p, Cin), one (Cout, Cin) tap each
    w_k = jnp.transpose(weight, (2, 3, 0, 1)).reshape(KK, Cout, Cin)
    w_k = jnp.pad(w_k, ((0, 0), (0, Cout_p - Cout), (0, 0))).astype(compute_dtype)

    # validity mask over the padded per-image output grid (h < H and w < W)
    cols = jnp.arange(L_out, dtype=jnp.int32)
    mask = ((cols < H * Wp) & ((cols % Wp) < W)).astype(jnp.float32)[None, :]

    itemsize = jnp.dtype(compute_dtype).itemsize

    # ---- pass 1: conv + partial BN stats (grid over batch, parallel) ----
    k1 = functools.partial(_conv_stats_kernel, KH=KH, KW=KW, Wp=Wp)
    conv_flat, stats = pl.pallas_call(
        k1,
        grid=(N,),
        in_specs=[
            pl.BlockSpec((1, Cin, Fp), lambda i: (i, 0, 0)),
            pl.BlockSpec((KK, Cout_p, Cin), lambda i: (0, 0, 0)),
            pl.BlockSpec((1, L_out), lambda i: (0, 0)),
        ],
        out_specs=[
            pl.BlockSpec((1, Cout_p, L_out), lambda i: (i, 0, 0)),
            pl.BlockSpec((1, Cout_p, 2), lambda i: (i, 0, 0)),
        ],
        out_shape=(
            jax.ShapeDtypeStruct((N, Cout_p, L_out), jnp.float32),
            jax.ShapeDtypeStruct((N, Cout_p, 2), jnp.float32),
        ),
        compiler_params=pltpu.CompilerParams(
            dimension_semantics=("parallel",),
            vmem_limit_bytes=32 * 1024 * 1024),
        cost_estimate=pl.CostEstimate(
            flops=2 * N * KK * Cin * Cout_p * L_out,
            transcendentals=0,
            bytes_accessed=(N * Cin * Fp * itemsize
                            + KK * Cout_p * Cin * itemsize
                            + N * Cout_p * L_out * 4
                            + N * Cout_p * 2 * 4)),
    )(x_flat, w_k, mask)

    # ---- tiny cross-image BN reduction + param folding (plain JAX, f32) ----
    psum = jnp.sum(stats, axis=0)                  # (Cout_p, 2)
    mean = psum[:, 0] / M_valid
    var = jnp.maximum(psum[:, 1] / M_valid - mean * mean, 0.0)  # clamp >= 0
    inv_std = jax.lax.rsqrt(var + BN_EPS)
    gamma_p = jnp.pad(gamma.astype(jnp.float32), (0, Cout_p - Cout))
    beta_p = jnp.pad(beta.astype(jnp.float32), (0, Cout_p - Cout))
    alpha_p = jnp.pad(alpha.astype(jnp.float32), (0, Cout_p - Cout))
    scale = gamma_p * inv_std
    shift = beta_p - mean * scale
    params = jnp.stack([scale, shift, alpha_p, jnp.zeros_like(scale)], axis=1)

    # ---- pass 2: fused BN affine + PReLU (grid over batch, parallel) ----
    out_full = pl.pallas_call(
        _bn_prelu_kernel,
        grid=(N,),
        in_specs=[
            pl.BlockSpec((1, Cout_p, L_out), lambda i: (i, 0, 0)),
            pl.BlockSpec((Cout_p, 4), lambda i: (0, 0)),
        ],
        out_specs=pl.BlockSpec((1, Cout_p, L_out), lambda i: (i, 0, 0)),
        out_shape=jax.ShapeDtypeStruct((N, Cout_p, L_out), x.dtype),
        compiler_params=pltpu.CompilerParams(
            dimension_semantics=("parallel",),
            vmem_limit_bytes=32 * 1024 * 1024),
        cost_estimate=pl.CostEstimate(
            flops=4 * N * Cout_p * L_out,
            transcendentals=0,
            bytes_accessed=2 * N * Cout_p * L_out * 4 + Cout_p * 4 * 4),
    )(conv_flat, params)

    # ---- glue: drop padded channels / padded spatial columns (already NCHW) ----
    out = out_full[:, :Cout, :H * Wp].reshape(N, Cout, H, Wp)[..., :W]
    return out


def _reference(x, weight, gamma, beta, alpha, compute_dtype=jnp.bfloat16):
    """Plain-JAX reference matching PyTorch ConvBlock.forward (training mode),
    with the conv operands cast to the same compute dtype as the kernel and
    f32 accumulation (BN / PReLU in f32)."""
    conv = jax.lax.conv_general_dilated(
        x.astype(compute_dtype), weight.astype(compute_dtype),
        window_strides=(1, 1), padding=((1, 1), (1, 1)),
        dimension_numbers=("NCHW", "OIHW", "NCHW"),
        preferred_element_type=jnp.float32)
    mean = jnp.mean(conv, axis=(0, 2, 3), keepdims=True)
    var = jnp.mean((conv - mean) ** 2, axis=(0, 2, 3), keepdims=True)
    y = (conv - mean) * jax.lax.rsqrt(var + BN_EPS)
    y = y * gamma[None, :, None, None] + beta[None, :, None, None]
    a = alpha[None, :, None, None]
    return jnp.where(y >= 0.0, y, a * y)


if __name__ == "__main__":
    key = jax.random.PRNGKey(0)
    k_x, k_w, k_g, k_b = jax.random.split(key, 4)

    N, Cin, H, W = 2, 4, 16, 16
    Cout, K = 8, 3

    x = jax.random.normal(k_x, (N, Cin, H, W), dtype=jnp.float32)
    weight = jax.random.normal(k_w, (Cout, Cin, K, K), dtype=jnp.float32) * 0.1
    gamma = 1.0 + 0.1 * jax.random.normal(k_g, (Cout,), dtype=jnp.float32)
    beta = 0.1 * jax.random.normal(k_b, (Cout,), dtype=jnp.float32)
    alpha = jnp.full((Cout,), 0.25, dtype=jnp.float32)  # PyTorch PReLU default

    out = conv_block_forward(x, weight, gamma, beta, alpha,
                             kernel_size=K, padding=1)
    out = jax.block_until_ready(out)

    ref = _reference(x, weight, gamma, beta, alpha, compute_dtype=jnp.bfloat16)
    assert out.shape == (N, Cout, H, W), out.shape
    assert jnp.allclose(out, ref, atol=5e-3, rtol=5e-3), \
        float(jnp.max(jnp.abs(out - ref)))

    print("KERNEL_OK")
</pallas_src>

<mosaic_0001>
module attributes {stable_mosaic.version = 11 : i64} {
  func.func @_conv_stats_kernel(%arg0: i32, %arg1: memref<1x4x512xbf16, #tpu.memory_space<vmem>>, %arg2: memref<9x8x4xbf16, #tpu.memory_space<vmem>>, %arg3: memref<1x384xf32, #tpu.memory_space<vmem>>, %arg4: memref<1x8x384xf32, #tpu.memory_space<vmem>>, %arg5: memref<1x8x2xf32, #tpu.memory_space<vmem>>) attributes {dimension_semantics = [#tpu.dimension_semantics<parallel>], iteration_bounds = array<i64: 2>, scalar_prefetch = 0 : i64, scratch_operands = 0 : i64, tpu.core_type = #tpu.core_type<tc>, window_params = [{transform_indices = @transform_0, window_bounds = array<i64: 1, 4, 512>}, {pipeline_mode = #tpu.pipeline_mode<synchronous>, transform_indices = @transform_1, window_bounds = array<i64: 9, 8, 4>}, {pipeline_mode = #tpu.pipeline_mode<synchronous>, transform_indices = @transform_2, window_bounds = array<i64: 1, 384>}, {transform_indices = @transform_3, window_bounds = array<i64: 1, 8, 384>}, {transform_indices = @transform_4, window_bounds = array<i64: 1, 8, 2>}]} {
    %c0 = arith.constant 0 : index
    %c0_0 = arith.constant 0 : index
    %c0_1 = arith.constant 0 : index
    %0 = vector.load %arg1[%c0, %c0_0, %c0_1] : memref<1x4x512xbf16, #tpu.memory_space<vmem>>, vector<1x4x512xbf16>
    %1 = vector.shape_cast %0 : vector<1x4x512xbf16> to vector<4x512xbf16>
    %cst = arith.constant 0.000000e+00 : f32
    %2 = vector.broadcast %cst : f32 to vector<8x384xf32>
    %3 = vector.extract_strided_slice %1 {offsets = [0, 0], sizes = [4, 384], strides = [1, 1]} : vector<4x512xbf16> to vector<4x384xbf16>
    %c0_2 = arith.constant 0 : index
    %c0_3 = arith.constant 0 : index
    %c0_4 = arith.constant 0 : index
    %4 = vector.load %arg2[%c0_2, %c0_3, %c0_4] : memref<9x8x4xbf16, #tpu.memory_space<vmem>>, vector<1x8x4xbf16>
    %5 = vector.shape_cast %4 : vector<1x8x4xbf16> to vector<8x4xbf16>
    %cst_5 = arith.constant dense<0.000000e+00> : vector<8x384xf32>
    %6 = tpu.matmul %5, %3, %cst_5 {dimension_numbers = #tpu.dot_dimension_numbers<[1], [0], [0], [1], [0, 0, 1, 1], [], []>} : vector<8x4xbf16>, vector<4x384xbf16>, vector<8x384xf32> -> vector<8x384xf32>
    %7 = arith.addf %2, %6 : vector<8x384xf32>
    %8 = vector.extract_strided_slice %1 {offsets = [0, 1], sizes = [4, 384], strides = [1, 1]} : vector<4x512xbf16> to vector<4x384xbf16>
    %c1 = arith.constant 1 : index
    %c0_6 = arith.constant 0 : index
    %c0_7 = arith.constant 0 : index
    %9 = vector.load %arg2[%c1, %c0_6, %c0_7] : memref<9x8x4xbf16, #tpu.memory_space<vmem>>, vector<1x8x4xbf16>
    %10 = vector.shape_cast %9 : vector<1x8x4xbf16> to vector<8x4xbf16>
    %cst_8 = arith.constant dense<0.000000e+00> : vector<8x384xf32>
    %11 = tpu.matmul %10, %8, %cst_8 {dimension_numbers = #tpu.dot_dimension_numbers<[1], [0], [0], [1], [0, 0, 1, 1], [], []>} : vector<8x4xbf16>, vector<4x384xbf16>, vector<8x384xf32> -> vector<8x384xf32>
    %12 = arith.addf %7, %11 : vector<8x384xf32>
    %13 = vector.extract_strided_slice %1 {offsets = [0, 2], sizes = [4, 384], strides = [1, 1]} : vector<4x512xbf16> to vector<4x384xbf16>
    %c2 = arith.constant 2 : index
    %c0_9 = arith.constant 0 : index
    %c0_10 = arith.constant 0 : index
    %14 = vector.load %arg2[%c2, %c0_9, %c0_10] : memref<9x8x4xbf16, #tpu.memory_space<vmem>>, vector<1x8x4xbf16>
    %15 = vector.shape_cast %14 : vector<1x8x4xbf16> to vector<8x4xbf16>
    %cst_11 = arith.constant dense<0.000000e+00> : vector<8x384xf32>
    %16 = tpu.matmul %15, %13, %cst_11 {dimension_numbers = #tpu.dot_dimension_numbers<[1], [0], [0], [1], [0, 0, 1, 1], [], []>} : vector<8x4xbf16>, vector<4x384xbf16>, vector<8x384xf32> -> vector<8x384xf32>
    %17 = arith.addf %12, %16 : vector<8x384xf32>
    %18 = vector.extract_strided_slice %1 {offsets = [0, 18], sizes = [4, 384], strides = [1, 1]} : vector<4x512xbf16> to vector<4x384xbf16>
    %c3 = arith.constant 3 : index
    %c0_12 = arith.constant 0 : index
    %c0_13 = arith.constant 0 : index
    %19 = vector.load %arg2[%c3, %c0_12, %c0_13] : memref<9x8x4xbf16, #tpu.memory_space<vmem>>, vector<1x8x4xbf16>
    %20 = vector.shape_cast %19 : vector<1x8x4xbf16> to vector<8x4xbf16>
    %cst_14 = arith.constant dense<0.000000e+00> : vector<8x384xf32>
    %21 = tpu.matmul %20, %18, %cst_14 {dimension_numbers = #tpu.dot_dimension_numbers<[1], [0], [0], [1], [0, 0, 1, 1], [], []>} : vector<8x4xbf16>, vector<4x384xbf16>, vector<8x384xf32> -> vector<8x384xf32>
    %22 = arith.addf %17, %21 : vector<8x384xf32>
    %23 = vector.extract_strided_slice %1 {offsets = [0, 19], sizes = [4, 384], strides = [1, 1]} : vector<4x512xbf16> to vector<4x384xbf16>
    %c4 = arith.constant 4 : index
    %c0_15 = arith.constant 0 : index
    %c0_16 = arith.constant 0 : index
    %24 = vector.load %arg2[%c4, %c0_15, %c0_16] : memref<9x8x4xbf16, #tpu.memory_space<vmem>>, vector<1x8x4xbf16>
    %25 = vector.shape_cast %24 : vector<1x8x4xbf16> to vector<8x4xbf16>
    %cst_17 = arith.constant dense<0.000000e+00> : vector<8x384xf32>
    %26 = tpu.matmul %25, %23, %cst_17 {dimension_numbers = #tpu.dot_dimension_numbers<[1], [0], [0], [1], [0, 0, 1, 1], [], []>} : vector<8x4xbf16>, vector<4x384xbf16>, vector<8x384xf32> -> vector<8x384xf32>
    %27 = arith.addf %22, %26 : vector<8x384xf32>
    %28 = vector.extract_strided_slice %1 {offsets = [0, 20], sizes = [4, 384], strides = [1, 1]} : vector<4x512xbf16> to vector<4x384xbf16>
    %c5 = arith.constant 5 : index
    %c0_18 = arith.constant 0 : index
    %c0_19 = arith.constant 0 : index
    %29 = vector.load %arg2[%c5, %c0_18, %c0_19] : memref<9x8x4xbf16, #tpu.memory_space<vmem>>, vector<1x8x4xbf16>
    %30 = vector.shape_cast %29 : vector<1x8x4xbf16> to vector<8x4xbf16>
    %cst_20 = arith.constant dense<0.000000e+00> : vector<8x384xf32>
    %31 = tpu.matmul %30, %28, %cst_20 {dimension_numbers = #tpu.dot_dimension_numbers<[1], [0], [0], [1], [0, 0, 1, 1], [], []>} : vector<8x4xbf16>, vector<4x384xbf16>, vector<8x384xf32> -> vector<8x384xf32>
    %32 = arith.addf %27, %31 : vector<8x384xf32>
    %33 = vector.extract_strided_slice %1 {offsets = [0, 36], sizes = [4, 384], strides = [1, 1]} : vector<4x512xbf16> to vector<4x384xbf16>
    %c6 = arith.constant 6 : index
    %c0_21 = arith.constant 0 : index
    %c0_22 = arith.constant 0 : index
    %34 = vector.load %arg2[%c6, %c0_21, %c0_22] : memref<9x8x4xbf16, #tpu.memory_space<vmem>>, vector<1x8x4xbf16>
    %35 = vector.shape_cast %34 : vector<1x8x4xbf16> to vector<8x4xbf16>
    %cst_23 = arith.constant dense<0.000000e+00> : vector<8x384xf32>
    %36 = tpu.matmul %35, %33, %cst_23 {dimension_numbers = #tpu.dot_dimension_numbers<[1], [0], [0], [1], [0, 0, 1, 1], [], []>} : vector<8x4xbf16>, vector<4x384xbf16>, vector<8x384xf32> -> vector<8x384xf32>
    %37 = arith.addf %32, %36 : vector<8x384xf32>
    %38 = vector.extract_strided_slice %1 {offsets = [0, 37], sizes = [4, 384], strides = [1, 1]} : vector<4x512xbf16> to vector<4x384xbf16>
    %c7 = arith.constant 7 : index
    %c0_24 = arith.constant 0 : index
    %c0_25 = arith.constant 0 : index
    %39 = vector.load %arg2[%c7, %c0_24, %c0_25] : memref<9x8x4xbf16, #tpu.memory_space<vmem>>, vector<1x8x4xbf16>
    %40 = vector.shape_cast %39 : vector<1x8x4xbf16> to vector<8x4xbf16>
    %cst_26 = arith.constant dense<0.000000e+00> : vector<8x384xf32>
    %41 = tpu.matmul %40, %38, %cst_26 {dimension_numbers = #tpu.dot_dimension_numbers<[1], [0], [0], [1], [0, 0, 1, 1], [], []>} : vector<8x4xbf16>, vector<4x384xbf16>, vector<8x384xf32> -> vector<8x384xf32>
    %42 = arith.addf %37, %41 : vector<8x384xf32>
    %43 = vector.extract_strided_slice %1 {offsets = [0, 38], sizes = [4, 384], strides = [1, 1]} : vector<4x512xbf16> to vector<4x384xbf16>
    %c8 = arith.constant 8 : index
    %c0_27 = arith.constant 0 : index
    %c0_28 = arith.constant 0 : index
    %44 = vector.load %arg2[%c8, %c0_27, %c0_28] : memref<9x8x4xbf16, #tpu.memory_space<vmem>>, vector<1x8x4xbf16>
    %45 = vector.shape_cast %44 : vector<1x8x4xbf16> to vector<8x4xbf16>
    %cst_29 = arith.constant dense<0.000000e+00> : vector<8x384xf32>
    %46 = tpu.matmul %45, %43, %cst_29 {dimension_numbers = #tpu.dot_dimension_numbers<[1], [0], [0], [1], [0, 0, 1, 1], [], []>} : vector<8x4xbf16>, vector<4x384xbf16>, vector<8x384xf32> -> vector<8x384xf32>
    %47 = arith.addf %42, %46 : vector<8x384xf32>
    %c0_30 = arith.constant 0 : index
    %c0_31 = arith.constant 0 : index
    %c0_32 = arith.constant 0 : index
    %48 = vector.load %arg4[%c0_30, %c0_31, %c0_32] : memref<1x8x384xf32, #tpu.memory_space<vmem>>, vector<1x8x384xf32>
    %49 = vector.shape_cast %48 : vector<1x8x384xf32> to vector<8x384xf32>
    %50 = vector.shape_cast %47 : vector<8x384xf32> to vector<1x8x384xf32>
    tpu.vector_store %arg4[%c0_30, %c0_31, %c0_32], %50 {strides = array<i32>} : memref<1x8x384xf32, #tpu.memory_space<vmem>>, vector<1x8x384xf32>,
    %c0_33 = arith.constant 0 : index
    %c0_34 = arith.constant 0 : index
    %51 = vector.load %arg3[%c0_33, %c0_34] : memref<1x384xf32, #tpu.memory_space<vmem>>, vector<1x384xf32>
    %52 = vector.broadcast %51 : vector<1x384xf32> to vector<8x384xf32>
    %53 = arith.mulf %47, %52 : vector<8x384xf32>
    %cst_35 = arith.constant dense<0.000000e+00> : vector<8xf32>
    %54 = vector.multi_reduction <add>, %53, %cst_35 [1] : vector<8x384xf32> to vector<8xf32>
    %55 = vector.shape_cast %54 : vector<8xf32> to vector<8x1xf32>
    %c0_36 = arith.constant 0 : index
    %c0_37 = arith.constant 0 : index
    %c0_38 = arith.constant 0 : index
    %56 = vector.load %arg5[%c0_36, %c0_37, %c0_38] : memref<1x8x2xf32, #tpu.memory_space<vmem>>, vector<1x8x1xf32>
    %57 = vector.shape_cast %56 : vector<1x8x1xf32> to vector<8x1xf32>
    %58 = vector.shape_cast %55 : vector<8x1xf32> to vector<1x8x1xf32>
    tpu.vector_store %arg5[%c0_36, %c0_37, %c0_38], %58 {strides = array<i32>} : memref<1x8x2xf32, #tpu.memory_space<vmem>>, vector<1x8x1xf32>,
    %59 = arith.mulf %53, %47 : vector<8x384xf32>
    %cst_39 = arith.constant dense<0.000000e+00> : vector<8xf32>
    %60 = vector.multi_reduction <add>, %59, %cst_39 [1] : vector<8x384xf32> to vector<8xf32>
    %61 = vector.shape_cast %60 : vector<8xf32> to vector<8x1xf32>
    %c0_40 = arith.constant 0 : index
    %c0_41 = arith.constant 0 : index
    %c1_42 = arith.constant 1 : index
    %62 = vector.load %arg5[%c0_40, %c0_41, %c1_42] : memref<1x8x2xf32, #tpu.memory_space<vmem>>, vector<1x8x1xf32>
    %63 = vector.shape_cast %62 : vector<1x8x1xf32> to vector<8x1xf32>
    %64 = vector.shape_cast %61 : vector<8x1xf32> to vector<1x8x1xf32>
    tpu.vector_store %arg5[%c0_40, %c0_41, %c1_42], %64 {strides = array<i32>} : memref<1x8x2xf32, #tpu.memory_space<vmem>>, vector<1x8x1xf32>,
    return
  }
  func.func @transform_0(%arg0: i32) -> (i32, i32, i32) {
    %c0_i32 = arith.constant 0 : i32
    %c0_i32_0 = arith.constant 0 : i32
    %c0_i32_1 = arith.constant 0 : i32
    return %arg0, %c0_i32, %c0_i32_0 : i32, i32, i32
  }
  func.func @transform_1(%arg0: i32) -> (i32, i32, i32) {
    %c0_i32 = arith.constant 0 : i32
    %c0_i32_0 = arith.constant 0 : i32
    %c0_i32_1 = arith.constant 0 : i32
    %c0_i32_2 = arith.constant 0 : i32
    return %c0_i32, %c0_i32_0, %c0_i32_1 : i32, i32, i32
  }
  func.func @transform_2(%arg0: i32) -> (i32, i32) {
    %c0_i32 = arith.constant 0 : i32
    %c0_i32_0 = arith.constant 0 : i32
    %c0_i32_1 = arith.constant 0 : i32
    return %c0_i32, %c0_i32_0 : i32, i32
  }
  func.func @transform_3(%arg0: i32) -> (i32, i32, i32) {
    %c0_i32 = arith.constant 0 : i32
    %c0_i32_0 = arith.constant 0 : i32
    %c0_i32_1 = arith.constant 0 : i32
    return %arg0, %c0_i32, %c0_i32_0 : i32, i32, i32
  }
  func.func @transform_4(%arg0: i32) -> (i32, i32, i32) {
    %c0_i32 = arith.constant 0 : i32
    %c0_i32_0 = arith.constant 0 : i32
    %c0_i32_1 = arith.constant 0 : i32
    return %arg0, %c0_i32, %c0_i32_0 : i32, i32, i32
  }
}

module attributes {stable_mosaic.version = 11 : i64} {
  func.func @_bn_prelu_kernel(%arg0: i32, %arg1: memref<1x8x384xf32, #tpu.memory_space<vmem>>, %arg2: memref<8x4xf32, #tpu.memory_space<vmem>>, %arg3: memref<1x8x384xf32, #tpu.memory_space<vmem>>) attributes {dimension_semantics = [#tpu.dimension_semantics<parallel>], iteration_bounds = array<i64: 2>, scalar_prefetch = 0 : i64, scratch_operands = 0 : i64, tpu.core_type = #tpu.core_type<tc>, window_params = [{transform_indices = @transform_0, window_bounds = array<i64: 1, 8, 384>}, {pipeline_mode = #tpu.pipeline_mode<synchronous>, transform_indices = @transform_1, window_bounds = array<i64: 8, 4>}, {transform_indices = @transform_2, window_bounds = array<i64: 1, 8, 384>}]} {
    %c0 = arith.constant 0 : index
    %c0_0 = arith.constant 0 : index
    %c0_1 = arith.constant 0 : index
    %0 = vector.load %arg1[%c0, %c0_0, %c0_1] : memref<1x8x384xf32, #tpu.memory_space<vmem>>, vector<1x8x384xf32>
    %1 = vector.shape_cast %0 : vector<1x8x384xf32> to vector<8x384xf32>
    %c0_2 = arith.constant 0 : index
    %c0_3 = arith.constant 0 : index
    %2 = vector.load %arg2[%c0_2, %c0_3] : memref<8x4xf32, #tpu.memory_space<vmem>>, vector<8x1xf32>
    %c0_4 = arith.constant 0 : index
    %c1 = arith.constant 1 : index
    %3 = vector.load %arg2[%c0_4, %c1] : memref<8x4xf32, #tpu.memory_space<vmem>>, vector<8x1xf32>
    %c0_5 = arith.constant 0 : index
    %c2 = arith.constant 2 : index
    %4 = vector.load %arg2[%c0_5, %c2] : memref<8x4xf32, #tpu.memory_space<vmem>>, vector<8x1xf32>
    %5 = vector.broadcast %2 : vector<8x1xf32> to vector<8x384xf32>
    %6 = arith.mulf %1, %5 : vector<8x384xf32>
    %7 = vector.broadcast %3 : vector<8x1xf32> to vector<8x384xf32>
    %8 = arith.addf %6, %7 : vector<8x384xf32>
    %cst = arith.constant 0.000000e+00 : f32
    %9 = vector.broadcast %cst : f32 to vector<8x384xf32>
    %10 = arith.cmpf oge, %8, %9 : vector<8x384xf32>
    %11 = vector.broadcast %4 : vector<8x1xf32> to vector<8x384xf32>
    %12 = arith.mulf %11, %8 : vector<8x384xf32>
    %13 = arith.select %10, %8, %12 : vector<8x384xi1>, vector<8x384xf32>
    %c0_6 = arith.constant 0 : index
    %c0_7 = arith.constant 0 : index
    %c0_8 = arith.constant 0 : index
    %14 = vector.load %arg3[%c0_6, %c0_7, %c0_8] : memref<1x8x384xf32, #tpu.memory_space<vmem>>, vector<1x8x384xf32>
    %15 = vector.shape_cast %14 : vector<1x8x384xf32> to vector<8x384xf32>
    %16 = vector.shape_cast %13 : vector<8x384xf32> to vector<1x8x384xf32>
    tpu.vector_store %arg3[%c0_6, %c0_7, %c0_8], %16 {strides = array<i32>} : memref<1x8x384xf32, #tpu.memory_space<vmem>>, vector<1x8x384xf32>,
    return
  }
  func.func @transform_0(%arg0: i32) -> (i32, i32, i32) {
    %c0_i32 = arith.constant 0 : i32
    %c0_i32_0 = arith.constant 0 : i32
    %c0_i32_1 = arith.constant 0 : i32
    return %arg0, %c0_i32, %c0_i32_0 : i32, i32, i32
  }
  func.func @transform_1(%arg0: i32) -> (i32, i32) {
    %c0_i32 = arith.constant 0 : i32
    %c0_i32_0 = arith.constant 0 : i32
    %c0_i32_1 = arith.constant 0 : i32
    return %c0_i32, %c0_i32_0 : i32, i32
  }
  func.func @transform_2(%arg0: i32) -> (i32, i32, i32) {
    %c0_i32 = arith.constant 0 : i32
    %c0_i32_0 = arith.constant 0 : i32
    %c0_i32_1 = arith.constant 0 : i32
    return %arg0, %c0_i32, %c0_i32_0 : i32, i32, i32
  }
}

</mosaic_0001>

<llo_original>
// kernel: conv_block_forward.3
$region0: #{conv_block_forward.3}
  #allocation0 [shape = 'u32[]', space=smem, size = 0x4, offset = 0x4, fixed_abs, tag = 'smem constant byte address 0x4 - core index']
  #allocation1 [shape = 'u32[144,128]{1,0:T(1,128)}', space=vmem, size = 0x12000, scoped, tag = 'internal scratch']
  %s0 = inlined_call_operand.vmem [shape: f32[2,8,384], index: 0, kind: input, shape index: {}]
  %s1 = inlined_call_operand.vmem [shape: f32[8,4], index: 1, kind: input, shape index: {}]
  %s2 = inlined_call_operand.vmem [shape: f32[2,8,384], index: 2, kind: output, shape index: {}]
  %s3 = sld [smem:[#allocation0]]
  $region41: #{conv_block_forward.3} parent=0
    _
  %s5 = ssub.s32 1, %s3
  %s6 = scalar_select 0, %s5, %s3
  loop: start=0, step=1, limit=4
  $region2: #{conv_block_forward.3} parent=0 // loop_pre_header
    _
  $region3: #{conv_block_forward.3} parent=0 // loop_header
    %s8 = sphi 0, %s12
    %p9 = scmp.ge.s32.totalorder %s8, 4
    %s18 = sphi 0, %s20
    %s21 = sphi 0, %s18
    %s22 = sphi 0, %s21
    %s38 = sphi 0, %s22
    %s42 = sphi 0, %s42
    %s44 = sphi 0, %s42
    %s45 = sphi 0, %s44
    %s59 = sphi 0, %s45
    %s65 = sphi 0, %s67
    %s68 = sphi 0, %s65
    %s69 = sphi 0, %s68
    %s85 = sphi 0, %s69
  $region4: #{conv_block_forward.3} parent=0 // loop_header_branch
    %11 = sbr.rel (%p9) target = $region8
  $region5: #{conv_block_forward.3} parent=0 // loop_body
    %s13 = ssub.s32 %s8, 1
    %s14 = ssub.s32 %s8, 2
    %s15 = sadd.s32 %s8, 1
    %s16 = ssub.s32 %s8, %s15
    %p17 = scmp.eq.s32.totalorder %s16, 0
    %s19 = sadd.s32 %s18, 1
    %s20 = scalar_select %p17, %s18, %s19
    %p23 = pneg %p17
    %p24 = scmp.eq.s32.totalorder %s8, 1
    %p25 = por %p23, %p24
    %p26 = scmp.ne.s32.totalorder %s18, %s21
    %p27 = scmp.eq.s32.totalorder %s8, 0
    %p28 = por %p26, %p27
    %p29 = scmp.ne.s32.totalorder %s18, %s21
    %p30 = scmp.eq.s32.totalorder %s13, 1
    %p31 = por %p29, %p30
    %p32 = scmp.ne.s32.totalorder %s21, %s22
    %p33 = scmp.eq.s32.totalorder %s13, 0
    %p34 = por %p32, %p33
    %p35 = scmp.ne.s32.totalorder %s21, %s22
    %p36 = scmp.eq.s32.totalorder %s14, 1
    %p37 = por %p35, %p36
    %p39 = scmp.ne.s32.totalorder %s22, %s38
    %p40 = scmp.eq.s32.totalorder %s14, 0
    %p41 = por %p39, %p40
    %s43 = sadd.s32 %s42, 1
    %p46 = scmp.eq.s32.totalorder %s8, 1
    %p47 = scmp.ne.s32.totalorder %s42, %s44
    %p48 = scmp.eq.s32.totalorder %s8, 0
    %p49 = por %p47, %p48
    %p50 = scmp.ne.s32.totalorder %s42, %s44
    %p51 = scmp.eq.s32.totalorder %s13, 1
    %p52 = por %p50, %p51
    %p53 = scmp.ne.s32.totalorder %s44, %s45
    %p54 = scmp.eq.s32.totalorder %s13, 0
    %p55 = por %p53, %p54
    %p56 = scmp.ne.s32.totalorder %s44, %s45
    %p57 = scmp.eq.s32.totalorder %s14, 1
    %p58 = por %p56, %p57
    %p60 = scmp.ne.s32.totalorder %s45, %s59
    %p61 = scmp.eq.s32.totalorder %s14, 0
    %p62 = por %p60, %p61
    %s63 = ssub.s32 %s8, %s15
    %p64 = scmp.eq.s32.totalorder %s63, 0
    %s66 = sadd.s32 %s65, 1
    %s67 = scalar_select %p64, %s65, %s66
    %p70 = pneg %p64
    %p71 = scmp.eq.s32.totalorder %s8, 1
    %p72 = por %p70, %p71
    %p73 = scmp.ne.s32.totalorder %s65, %s68
    %p74 = scmp.eq.s32.totalorder %s8, 0
    %p75 = por %p73, %p74
    %p76 = scmp.ne.s32.totalorder %s65, %s68
    %p77 = scmp.eq.s32.totalorder %s13, 1
    %p78 = por %p76, %p77
    %p79 = scmp.ne.s32.totalorder %s68, %s69
    %p80 = scmp.eq.s32.totalorder %s13, 0
    %p81 = por %p79, %p80
    %p82 = scmp.ne.s32.totalorder %s68, %s69
    %p83 = scmp.eq.s32.totalorder %s14, 1
    %p84 = por %p82, %p83
    %p86 = scmp.ne.s32.totalorder %s69, %s85
    %p87 = scmp.eq.s32.totalorder %s14, 0
    %p88 = por %p86, %p87
    %p89 = scmp.le.s32.totalorder 1, %s8
    %p90 = scmp.lt.s32.totalorder %s8, 3
    %p91 = pnand %p89, %p90
    %p92 = pneg %p91
    // Predicated region
    $region9: #{conv_block_forward.3} parent=5 // pred_check
      _
    $region10: #{conv_block_forward.3} parent=5 // pred_check_branch
      %94 = sbr.rel (%p91) target = $region12
    $region11: #{conv_block_forward.3} parent=5 // pred_region
      %s95 = ssub.s32 %s8, 1
      // Predicated region
      $region13: #{conv_block_forward.3} parent=11 // pred_check
        %p96 = pneg %p55
      $region14: #{conv_block_forward.3} parent=11 // pred_check_branch
        %98 = sbr.rel (%p96) target = $region16
      $region15: #{conv_block_forward.3} parent=11 // pred_region
        _
      $region16: #{conv_block_forward.3} parent=11 // pred_fallthru
        _
    $region12: #{conv_block_forward.3} parent=5 // pred_fallthru
      _
    %p99 = scmp.lt.s32.totalorder %s8, 2
    // Predicated region
    $region17: #{conv_block_forward.3} parent=5 // pred_check
      %p100 = pneg %p99
    $region18: #{conv_block_forward.3} parent=5 // pred_check_branch
      %102 = sbr.rel (%p100) target = $region20
    $region19: #{conv_block_forward.3} parent=5 // pred_region
      // Predicated region
      $region21: #{conv_block_forward.3} parent=19 // pred_check
        %p103 = pneg %p28
      $region22: #{conv_block_forward.3} parent=19 // pred_check_branch
        %105 = sbr.rel (%p103) target = $region24
      $region23: #{conv_block_forward.3} parent=19 // pred_region
        %p106 = scmp.lt.s32.totalorder %s8, 1
        %s107 = scalar_select %p106, %s8, 1
        %s108 = smul.addr %s107, 3
        %s109 = smul.addr %s108, 8
        %s110 = scalar_lea.vmem %s0, %s109
      $region24: #{conv_block_forward.3} parent=19 // pred_fallthru
        _
    $region20: #{conv_block_forward.3} parent=5 // pred_fallthru
      _
    %p111 = scmp.le.s32.totalorder 1, %s8
    %p112 = scmp.lt.s32.totalorder %s8, 3
    %p113 = pnand %p111, %p112
    %p114 = pneg %p113
    // Predicated region
    $region25: #{conv_block_forward.3} parent=5 // pred_check
      _
    $region26: #{conv_block_forward.3} parent=5 // pred_check_branch
      %116 = sbr.rel (%p113) target = $region28
    $region27: #{conv_block_forward.3} parent=5 // pred_region
      %s117 = ssub.s32 %s8, 1
      %p118 = scmp.lt.s32.totalorder %s13, 1
      %s119 = scalar_select %p118, %s13, 1
      %s120 = smul.addr %s119, 3
      %s121 = smul.addr %s120, 8
      %s122 = scalar_lea.vmem %s0, %s121
      %p123 = pneg %p34
      %p124 = pneg %p31
      %p125 = pneg %p55
      %p126 = pneg %p52
      %p127 = pneg %p81
      %p128 = pneg %p78
      %p129 = scmp.lt.s32.totalorder %s13, 1
      %s130 = scalar_select %p129, %s13, 1
      %s131 = smul.addr %s130, 3
      %s132 = smul.addr %s131, 8
      %s133 = scalar_lea.vmem %s2, %s132
      %p134 = scmp.lt.s32.totalorder %s13, 1
      %s135 = scalar_select %p134, %s13, 1
      %s136 = smul.addr %s135, 3
      %s137 = smul.addr %s136, 8
      %s138 = scalar_lea.vmem %s0, %s137
      %p139 = scmp.lt.s32.totalorder %s13, 1
      %s140 = scalar_select %p139, %s13, 1
      %s141 = smul.addr %s140, 3
      %s142 = smul.addr %s141, 8
      %s143 = scalar_lea.vmem %s2, %s142
      %v144 = vld [vmem:[%s138] sm:$0xff]
      %v145 = vld [vmem:[%s138 + $0x8] sm:$0xff]
      %v146 = vld [vmem:[%s138 + $0x10] sm:$0xff]
      %v147 = vld [vmem:[%s1] sm:$0xff]
      %149 = vset.pattern.permute.xlu0 0
      %150 = vperm.xlu0 %149, %v147
      %v151 = vpop.permute.xlu0 %150
      %v153 = vmul.f32 %v144, %v151
      %v154 = vmul.f32 %v145, %v151
      %v155 = vmul.f32 %v146, %v151
      %156 = vset.pattern.permute.xlu0 1
      %157 = vperm.xlu0 %156, %v147
      %v158 = vpop.permute.xlu0 %157
      %v160 = vadd.f32 %v153, %v158
      %v161 = vadd.f32 %v154, %v158
      %v162 = vadd.f32 %v155, %v158
      %vm163 = vcmp.ge.f32.partialorder %v160, 0.0
      %vm164 = vcmp.ge.f32.partialorder %v161, 0.0
      %vm165 = vcmp.ge.f32.partialorder %v162, 0.0
      %166 = vset.pattern.permute.xlu0 2
      %167 = vperm.xlu0 %166, %v147
      %v168 = vpop.permute.xlu0 %167
      %v170 = vmul.f32 %v168, %v160
      %v171 = vmul.f32 %v168, %v161
      %v172 = vmul.f32 %v168, %v162
      %v173 = vsel %vm163, %v160, %v170
      %v174 = vsel %vm164, %v161, %v171
      %v175 = vsel %vm165, %v162, %v172
      %176 = vst [vmem:[%s143] sm:$0xff] %v173
      %177 = vst [vmem:[%s143 + $0x8] sm:$0xff] %v174
      %178 = vst [vmem:[%s143 + $0x10] sm:$0xff] %v175
      %p179 = scmp.lt.s32.totalorder %s13, 1
      %s180 = scalar_select %p179, %s13, 1
      %s181 = smul.addr %s180, 3
      %s182 = smul.addr %s181, 8
      %s183 = scalar_lea.vmem %s2, %s182
      // Predicated region
      $region29: #{conv_block_forward.3} parent=27 // pred_check
        %p184 = pneg %p78
      $region30: #{conv_block_forward.3} parent=27 // pred_check_branch
        %186 = sbr.rel (%p184) target = $region32
      $region31: #{conv_block_forward.3} parent=27 // pred_region
        _
      $region32: #{conv_block_forward.3} parent=27 // pred_fallthru
        _
    $region28: #{conv_block_forward.3} parent=5 // pred_fallthru
      _
    %p187 = scmp.le.s32.totalorder 2, %s8
    // Predicated region
    $region33: #{conv_block_forward.3} parent=5 // pred_check
      %p188 = pneg %p187
    $region34: #{conv_block_forward.3} parent=5 // pred_check_branch
      %190 = sbr.rel (%p188) target = $region36
    $region35: #{conv_block_forward.3} parent=5 // pred_region
      %s191 = ssub.s32 %s8, 2
      // Predicated region
      $region37: #{conv_block_forward.3} parent=35 // pred_check
        %p192 = pneg %p84
      $region38: #{conv_block_forward.3} parent=35 // pred_check_branch
        %194 = sbr.rel (%p192) target = $region40
      $region39: #{conv_block_forward.3} parent=35 // pred_region
        %p195 = scmp.lt.s32.totalorder %s14, 1
        %s196 = scalar_select %p195, %s14, 1
        %s197 = smul.addr %s196, 3
        %s198 = smul.addr %s197, 8
        %s199 = scalar_lea.vmem %s2, %s198
      $region40: #{conv_block_forward.3} parent=35 // pred_fallthru
        _
    $region36: #{conv_block_forward.3} parent=5 // pred_fallthru
      _
  $region6: #{conv_block_forward.3} parent=0 // loop_footer
    %s12 = sadd.s32 1, %s8
  $region7: #{conv_block_forward.3} parent=0 // loop_footer_branch
    %7 = sbr.rel target = $region3
  $region8: #{conv_block_forward.3} parent=0 // loop_exit
    _

// kernel: conv_block_forward.2
$region0: #{conv_block_forward.2}
  #allocation0 [shape = 'u32[]', space=smem, size = 0x4, offset = 0x4, fixed_abs, tag = 'smem constant byte address 0x4 - core index']
  #allocation1 [shape = 'u32[144,128]{1,0:T(1,128)}', space=vmem, size = 0x12000, scoped, tag = 'internal scratch']
  %s0 = inlined_call_operand.vmem [shape: bf16[2,4,512], index: 0, kind: input, shape index: {}]
  %s1 = inlined_call_operand.vmem [shape: bf16[9,8,4], index: 1, kind: input, shape index: {}]
  %s2 = inlined_call_operand.vmem [shape: f32[1,384], index: 2, kind: input, shape index: {}]
  %s3 = inlined_call_operand.vmem [shape: f32[2,8,384], index: 3, kind: output, shape index: {0}]
  %s4 = inlined_call_operand.vmem [shape: f32[2,8,2], index: 4, kind: output, shape index: {1}]
  %5 = xla_tuple %s3, %s4
  %s6 = sld [smem:[#allocation0]]
  $region53: #{conv_block_forward.2} parent=0
    _
  %s8 = ssub.s32 1, %s6
  %s9 = scalar_select 0, %s8, %s6
  loop: start=0, step=1, limit=4
  $region2: #{conv_block_forward.2} parent=0 // loop_pre_header
    _
  $region3: #{conv_block_forward.2} parent=0 // loop_header
    %s11 = sphi 0, %s15
    %p12 = scmp.ge.s32.totalorder %s11, 4
    %s21 = sphi 0, %s23
    %s24 = sphi 0, %s21
    %s25 = sphi 0, %s24
    %s41 = sphi 0, %s25
    %s45 = sphi 0, %s45
    %s47 = sphi 0, %s45
    %s48 = sphi 0, %s47
    %s62 = sphi 0, %s48
    %s66 = sphi 0, %s66
    %s68 = sphi 0, %s66
    %s69 = sphi 0, %s68
    %s83 = sphi 0, %s69
    %s89 = sphi 0, %s91
    %s92 = sphi 0, %s89
    %s93 = sphi 0, %s92
    %s109 = sphi 0, %s93
    %s115 = sphi 0, %s117
    %s118 = sphi 0, %s115
    %s119 = sphi 0, %s118
    %s135 = sphi 0, %s119
  $region4: #{conv_block_forward.2} parent=0 // loop_header_branch
    %14 = sbr.rel (%p12) target = $region8
  $region5: #{conv_block_forward.2} parent=0 // loop_body
    %s16 = ssub.s32 %s11, 1
    %s17 = ssub.s32 %s11, 2
    %s18 = sadd.s32 %s11, 1
    %s19 = ssub.s32 %s11, %s18
    %p20 = scmp.eq.s32.totalorder %s19, 0
    %s22 = sadd.s32 %s21, 1
    %s23 = scalar_select %p20, %s21, %s22
    %p26 = pneg %p20
    %p27 = scmp.eq.s32.totalorder %s11, 1
    %p28 = por %p26, %p27
    %p29 = scmp.ne.s32.totalorder %s21, %s24
    %p30 = scmp.eq.s32.totalorder %s11, 0
    %p31 = por %p29, %p30
    %p32 = scmp.ne.s32.totalorder %s21, %s24
    %p33 = scmp.eq.s32.totalorder %s16, 1
    %p34 = por %p32, %p33
    %p35 = scmp.ne.s32.totalorder %s24, %s25
    %p36 = scmp.eq.s32.totalorder %s16, 0
    %p37 = por %p35, %p36
    %p38 = scmp.ne.s32.totalorder %s24, %s25
    %p39 = scmp.eq.s32.totalorder %s17, 1
    %p40 = por %p38, %p39
    %p42 = scmp.ne.s32.totalorder %s25, %s41
    %p43 = scmp.eq.s32.totalorder %s17, 0
    %p44 = por %p42, %p43
    %s46 = sadd.s32 %s45, 1
    %p49 = scmp.eq.s32.totalorder %s11, 1
    %p50 = scmp.ne.s32.totalorder %s45, %s47
    %p51 = scmp.eq.s32.totalorder %s11, 0
    %p52 = por %p50, %p51
    %p53 = scmp.ne.s32.totalorder %s45, %s47
    %p54 = scmp.eq.s32.totalorder %s16, 1
    %p55 = por %p53, %p54
    %p56 = scmp.ne.s32.totalorder %s47, %s48
    %p57 = scmp.eq.s32.totalorder %s16, 0
    %p58 = por %p56, %p57
    %p59 = scmp.ne.s32.totalorder %s47, %s48
    %p60 = scmp.eq.s32.totalorder %s17, 1
    %p61 = por %p59, %p60
    %p63 = scmp.ne.s32.totalorder %s48, %s62
    %p64 = scmp.eq.s32.totalorder %s17, 0
    %p65 = por %p63, %p64
    %s67 = sadd.s32 %s66, 1
    %p70 = scmp.eq.s32.totalorder %s11, 1
    %p71 = scmp.ne.s32.totalorder %s66, %s68
    %p72 = scmp.eq.s32.totalorder %s11, 0
    %p73 = por %p71, %p72
    %p74 = scmp.ne.s32.totalorder %s66, %s68
    %p75 = scmp.eq.s32.totalorder %s16, 1
    %p76 = por %p74, %p75
    %p77 = scmp.ne.s32.totalorder %s68, %s69
    %p78 = scmp.eq.s32.totalorder %s16, 0
    %p79 = por %p77, %p78
    %p80 = scmp.ne.s32.totalorder %s68, %s69
    %p81 = scmp.eq.s32.totalorder %s17, 1
    %p82 = por %p80, %p81
    %p84 = scmp.ne.s32.totalorder %s69, %s83
    %p85 = scmp.eq.s32.totalorder %s17, 0
    %p86 = por %p84, %p85
    %s87 = ssub.s32 %s11, %s18
    %p88 = scmp.eq.s32.totalorder %s87, 0
    %s90 = sadd.s32 %s89, 1
    %s91 = scalar_select %p88, %s89, %s90
    %p94 = pneg %p88
    %p95 = scmp.eq.s32.totalorder %s11, 1
    %p96 = por %p94, %p95
    %p97 = scmp.ne.s32.totalorder %s89, %s92
    %p98 = scmp.eq.s32.totalorder %s11, 0
    %p99 = por %p97, %p98
    %p100 = scmp.ne.s32.totalorder %s89, %s92
    %p101 = scmp.eq.s32.totalorder %s16, 1
    %p102 = por %p100, %p101
    %p103 = scmp.ne.s32.totalorder %s92, %s93
    %p104 = scmp.eq.s32.totalorder %s16, 0
    %p105 = por %p103, %p104
    %p106 = scmp.ne.s32.totalorder %s92, %s93
    %p107 = scmp.eq.s32.totalorder %s17, 1
    %p108 = por %p106, %p107
    %p110 = scmp.ne.s32.totalorder %s93, %s109
    %p111 = scmp.eq.s32.totalorder %s17, 0
    %p112 = por %p110, %p111
    %s113 = ssub.s32 %s11, %s18
    %p114 = scmp.eq.s32.totalorder %s113, 0
    %s116 = sadd.s32 %s115, 1
    %s117 = scalar_select %p114, %s115, %s116
    %p120 = pneg %p114
    %p121 = scmp.eq.s32.totalorder %s11, 1
    %p122 = por %p120, %p121
    %p123 = scmp.ne.s32.totalorder %s115, %s118
    %p124 = scmp.eq.s32.totalorder %s11, 0
    %p125 = por %p123, %p124
    %p126 = scmp.ne.s32.totalorder %s115, %s118
    %p127 = scmp.eq.s32.totalorder %s16, 1
    %p128 = por %p126, %p127
    %p129 = scmp.ne.s32.totalorder %s118, %s119
    %p130 = scmp.eq.s32.totalorder %s16, 0
    %p131 = por %p129, %p130
    %p132 = scmp.ne.s32.totalorder %s118, %s119
    %p133 = scmp.eq.s32.totalorder %s17, 1
    %p134 = por %p132, %p133
    %p136 = scmp.ne.s32.totalorder %s119, %s135
    %p137 = scmp.eq.s32.totalorder %s17, 0
    %p138 = por %p136, %p137
    %p139 = scmp.le.s32.totalorder 1, %s11
    %p140 = scmp.lt.s32.totalorder %s11, 3
    %p141 = pnand %p139, %p140
    %p142 = pneg %p141
    // Predicated region
    $region9: #{conv_block_forward.2} parent=5 // pred_check
      _
    $region10: #{conv_block_forward.2} parent=5 // pred_check_branch
      %144 = sbr.rel (%p141) target = $region12
    $region11: #{conv_block_forward.2} parent=5 // pred_region
      %s145 = ssub.s32 %s11, 1
      // Predicated region
      $region13: #{conv_block_forward.2} parent=11 // pred_check
        %p146 = pneg %p58
      $region14: #{conv_block_forward.2} parent=11 // pred_check_branch
        %148 = sbr.rel (%p146) target = $region16
      $region15: #{conv_block_forward.2} parent=11 // pred_region
        _
      $region16: #{conv_block_forward.2} parent=11 // pred_fallthru
        _
      // Predicated region
      $region17: #{conv_block_forward.2} parent=11 // pred_check
        %p149 = pneg %p79
      $region18: #{conv_block_forward.2} parent=11 // pred_check_branch
        %151 = sbr.rel (%p149) target = $region20
      $region19: #{conv_block_forward.2} parent=11 // pred_region
        _
      $region20: #{conv_block_forward.2} parent=11 // pred_fallthru
        _
    $region12: #{conv_block_forward.2} parent=5 // pred_fallthru
      _
    %p152 = scmp.lt.s32.totalorder %s11, 2
    // Predicated region
    $region21: #{conv_block_forward.2} parent=5 // pred_check
      %p153 = pneg %p152
    $region22: #{conv_block_forward.2} parent=5 // pred_check_branch
      %155 = sbr.rel (%p153) target = $region24
    $region23: #{conv_block_forward.2} parent=5 // pred_region
      // Predicated region
      $region25: #{conv_block_forward.2} parent=23 // pred_check
        %p156 = pneg %p31
      $region26: #{conv_block_forward.2} parent=23 // pred_check_branch
        %158 = sbr.rel (%p156) target = $region28
      $region27: #{conv_block_forward.2} parent=23 // pred_region
        %p159 = scmp.lt.s32.totalorder %s11, 1
        %s160 = scalar_select %p159, %s11, 1
        %s161 = smul.addr %s160, 4
        %s162 = smul.addr %s161, 2
        %s163 = scalar_lea.vmem %s0, %s162
      $region28: #{conv_block_forward.2} parent=23 // pred_fallthru
        _
    $region24: #{conv_block_forward.2} parent=5 // pred_fallthru
      _
    %p164 = scmp.le.s32.totalorder 1, %s11
    %p165 = scmp.lt.s32.totalorder %s11, 3
    %p166 = pnand %p164, %p165
    %p167 = pneg %p166
    // Predicated region
    $region29: #{conv_block_forward.2} parent=5 // pred_check
      _
    $region30: #{conv_block_forward.2} parent=5 // pred_check_branch
      %169 = sbr.rel (%p166) target = $region32
    $region31: #{conv_block_forward.2} parent=5 // pred_region
      %s170 = ssub.s32 %s11, 1
      %p171 = scmp.lt.s32.totalorder %s16, 1
      %s172 = scalar_select %p171, %s16, 1
      %s173 = smul.addr %s172, 4
      %s174 = smul.addr %s173, 2
      %s175 = scalar_lea.vmem %s0, %s174
      %p176 = pneg %p37
      %p177 = pneg %p34
      %p178 = pneg %p58
      %p179 = pneg %p55
      %p180 = pneg %p79
      %p181 = pneg %p76
      %p182 = pneg %p105
      %p183 = pneg %p102
      %p184 = scmp.lt.s32.totalorder %s16, 1
      %s185 = scalar_select %p184, %s16, 1
      %s186 = smul.addr %s185, 3
      %s187 = smul.addr %s186, 8
      %s188 = scalar_lea.vmem %s3, %s187
      %p189 = pneg %p131
      %p190 = pneg %p128
      %p191 = scmp.lt.s32.totalorder %s16, 1
      %s192 = scalar_select %p191, %s16, 1
      %s193 = smul.addr %s192, 8
      %s194 = scalar_lea.vmem %s4, %s193
      %p195 = scmp.lt.s32.totalorder %s16, 1
      %s196 = scalar_select %p195, %s16, 1
      %s197 = smul.addr %s196, 4
      %s198 = smul.addr %s197, 2
      %s199 = scalar_lea.vmem %s0, %s198
      %p200 = scmp.lt.s32.totalorder %s16, 1
      %s201 = scalar_select %p200, %s16, 1
      %s202 = smul.addr %s201, 3
      %s203 = smul.addr %s202, 8
      %s204 = scalar_lea.vmem %s3, %s203
      %p205 = scmp.lt.s32.totalorder %s16, 1
      %s206 = scalar_select %p205, %s16, 1
      %s207 = smul.addr %s206, 8
      %s208 = scalar_lea.vmem %s4, %s207
      %v210 = vld [vmem:[%s199] sm:$0xff]
      %v211 = vld [vmem:[%s1] sm:$0xf]
      %s212 = scalar_lea.vmem %s1, 4
      %v213 = vld [vmem:[%s212] sm:$0xf]
      %v215 = vcombine.high %v210, %v210
      %v217 = vunpack.c.l.s4 1983009808
      %v218 = vunpack.c.0.s8 %v217
      %v219 = vlaneseq
      %v220 = vshrl.u32 %v219, 7
      %v221 = vsub.s32 %v218, %v220
      %v222 = vrot.slane %v210, %v221
      %v224 = vunpack.c.l.s4 1983009808
      %v225 = vunpack.c.0.s8 %v224
      %v226 = vlaneseq
      %v227 = vshrl.u32 %v226, 7
      %v228 = vsub.s32 %v225, %v227
      %v229 = vrot.slane %v215, %v228
      %v230 = vcombine.high %v222, %v222
      %v231 = vcombine.high %v229, %v229
      %232 = vrot.lane.b32.xlu0 %v222, 127
      %v233 = vpop.permute.xlu0 %232
      %234 = vrot.lane.b32.xlu0 %v230, 127
      %v235 = vpop.permute.xlu0 %234
      %236 = vrot.lane.b32.xlu0 %v229, 127
      %v237 = vpop.permute.xlu0 %236
      %238 = vrot.lane.b32.xlu0 %v231, 127
      %v239 = vpop.permute.xlu0 %238
      %vm240 = vcmask 1039360
      %v241 = vsel %vm240, %v233, %v235
      %v242 = vsel %vm240, %v235, %v237
      %v243 = vsel %vm240, %v237, %v239
      %vm244 = vcmask 31744
      %v246 = vsel %vm244, %v213, 0
      %vm248 = vcmask 1041408
      %v250 = vsel %vm248, %v241, 0
      %v253 = vsel %vm248, %v242, 0
      %v256 = vsel %vm248, %v243, 0
      %258 = vmatprep.subr.bf16.mxu0 %v253
      %259 = vmatpush1.bf16.msra.mxu0 %v250
      %260 = vmatprep.subr.bf16.mxu0 0
      %261 = vmatpush1.bf16.msra.mxu0 0
      %262 = vmatprep.subr.bf16.mxu0 0
      %263 = vmatpush1.bf16.msra.mxu0 0
      %264 = vmatprep.subr.bf16.mxu0 0
      %265 = vmatpush1.bf16.msra.mxu0 0
      %266 = vmatprep.subr.bf16.mxu0 0
      %267 = vmatpush1.bf16.msra.mxu0 0
      %268 = vmatprep.subr.bf16.mxu0 0
      %269 = vmatpush1.bf16.msra.mxu0 0
      %270 = vmatprep.subr.bf16.mxu0 0
      %271 = vmatpush1.bf16.msra.mxu0 0
      %272 = vmatprep.subr.bf16.mxu0 0
      %273 = vmatpush1.bf16.msra.mxu0 0
      %274 = vmatprep.subr.bf16.mxu0 0
      %275 = vmatpush1.bf16.msra.mxu0 0
      %276 = vmatprep.subr.bf16.mxu0 0
      %277 = vmatpush1.bf16.msra.mxu0 0
      %278 = vmatprep.subr.bf16.mxu0 0
      %279 = vmatpush1.bf16.msra.mxu0 0
      %280 = vmatprep.subr.bf16.mxu0 0
      %281 = vmatpush1.bf16.msra.mxu0 0
      %282 = vmatprep.subr.bf16.mxu0 0
      %283 = vmatpush1.bf16.msra.mxu0 0
      %284 = vmatprep.subr.bf16.mxu0 0
      %285 = vmatpush1.bf16.msra.mxu0 0
      %286 = vmatprep.subr.bf16.mxu0 0
      %287 = vmatpush1.bf16.msra.mxu0 0
      %288 = vmatprep.subr.bf16.mxu0 0
      %289 = vmatpush1.bf16.msra.mxu0 0
      %290 = vmatprep.mubr.bf16.mxu0 0
      %291 = vmatmul.mubr.bf16.gmra.mrb[0].mxu0 %v246
      %v292 = vpop.f32.mrb[0].mxu0
      %v293 = vadd.f32 0.0, %v292
      %v294 = vpop.f32.mrb[0].mxu0
      %v295 = vadd.f32 0.0, %v294
      %v296 = vpop.f32.mrb[0].mxu0
      %v297 = vpop.f32.mrb[0].mxu0
      %298 = vdwg.mxu0
      %299 = vmatprep.subr.bf16.mxu0 0
      %300 = vmatpush1.bf16.msra.mxu0 %v256
      %301 = vmatprep.subr.bf16.mxu0 0
      %302 = vmatpush1.bf16.msra.mxu0 0
      %303 = vmatprep.subr.bf16.mxu0 0
      %304 = vmatpush1.bf16.msra.mxu0 0
      %305 = vmatprep.subr.bf16.mxu0 0
      %306 = vmatpush1.bf16.msra.mxu0 0
      %307 = vmatprep.subr.bf16.mxu0 0
      %308 = vmatpush1.bf16.msra.mxu0 0
      %309 = vmatprep.subr.bf16.mxu0 0
      %310 = vmatpush1.bf16.msra.mxu0 0
      %311 = vmatprep.subr.bf16.mxu0 0
      %312 = vmatpush1.bf16.msra.mxu0 0
      %313 = vmatprep.subr.bf16.mxu0 0
      %314 = vmatpush1.bf16.msra.mxu0 0
      %315 = vmatprep.subr.bf16.mxu0 0
      %316 = vmatpush1.bf16.msra.mxu0 0
      %317 = vmatprep.subr.bf16.mxu0 0
      %318 = vmatpush1.bf16.msra.mxu0 0
      %319 = vmatprep.subr.bf16.mxu0 0
      %320 = vmatpush1.bf16.msra.mxu0 0
      %321 = vmatprep.subr.bf16.mxu0 0
      %322 = vmatpush1.bf16.msra.mxu0 0
      %323 = vmatprep.subr.bf16.mxu0 0
      %324 = vmatpush1.bf16.msra.mxu0 0
      %325 = vmatprep.subr.bf16.mxu0 0
      %326 = vmatpush1.bf16.msra.mxu0 0
      %327 = vmatprep.subr.bf16.mxu0 0
      %328 = vmatpush1.bf16.msra.mxu0 0
      %329 = vmatprep.subr.bf16.mxu0 0
      %330 = vmatpush1.bf16.msra.mxu0 0
      %331 = vmatprep.mubr.bf16.mxu0 0
      %332 = vmatmul.mubr.bf16.gmra.mrb[0].mxu0 %v246
      %v333 = vpop.f32.mrb[0].mxu0
      %v334 = vadd.f32 0.0, %v333
      %v335 = vpop.f32.mrb[0].mxu0
      %v336 = vpop.f32.mrb[0].mxu0
      %v337 = vpop.f32.mrb[0].mxu0
      %338 = vdwg.mxu0
      %v340 = vsel %vm244, %v211, 0
      %v343 = vsel %vm248, %v222, 0
      %v346 = vsel %vm248, %v230, 0
      %v349 = vsel %vm248, %v229, 0
      %351 = vmatprep.subr.bf16.mxu0 %v346
      %352 = vmatpush1.bf16.msra.mxu0 %v343
      %353 = vmatprep.subr.bf16.mxu0 0
      %354 = vmatpush1.bf16.msra.mxu0 0
      %355 = vmatprep.subr.bf16.mxu0 0
      %356 = vmatpush1.bf16.msra.mxu0 0
      %357 = vmatprep.subr.bf16.mxu0 0
      %358 = vmatpush1.bf16.msra.mxu0 0
      %359 = vmatprep.subr.bf16.mxu0 0
      %360 = vmatpush1.bf16.msra.mxu0 0
      %361 = vmatprep.subr.bf16.mxu0 0
      %362 = vmatpush1.bf16.msra.mxu0 0
      %363 = vmatprep.subr.bf16.mxu0 0
      %364 = vmatpush1.bf16.msra.mxu0 0
      %365 = vmatprep.subr.bf16.mxu0 0
      %366 = vmatpush1.bf16.msra.mxu0 0
      %367 = vmatprep.subr.bf16.mxu0 0
      %368 = vmatpush1.bf16.msra.mxu0 0
      %369 = vmatprep.subr.bf16.mxu0 0
      %370 = vmatpush1.bf16.msra.mxu0 0
      %371 = vmatprep.subr.bf16.mxu0 0
      %372 = vmatpush1.bf16.msra.mxu0 0
      %373 = vmatprep.subr.bf16.mxu0 0
      %374 = vmatpush1.bf16.msra.mxu0 0
      %375 = vmatprep.subr.bf16.mxu0 0
      %376 = vmatpush1.bf16.msra.mxu0 0
      %377 = vmatprep.subr.bf16.mxu0 0
      %378 = vmatpush1.bf16.msra.mxu0 0
      %379 = vmatprep.subr.bf16.mxu0 0
      %380 = vmatpush1.bf16.msra.mxu0 0
      %381 = vmatprep.subr.bf16.mxu0 0
      %382 = vmatpush1.bf16.msra.mxu0 0
      %383 = vmatprep.mubr.bf16.mxu0 0
      %384 = vmatmul.mubr.bf16.gmra.mrb[0].mxu0 %v340
      %v385 = vpop.f32.mrb[0].mxu0
      %v386 = vadd.f32 %v293, %v385
      %v387 = vpop.f32.mrb[0].mxu0
      %v388 = vadd.f32 %v295, %v387
      %v389 = vpop.f32.mrb[0].mxu0
      %v390 = vpop.f32.mrb[0].mxu0
      %391 = vdwg.mxu0
      %392 = vmatprep.subr.bf16.mxu0 0
      %393 = vmatpush1.bf16.msra.mxu0 %v349
      %394 = vmatprep.subr.bf16.mxu0 0
      %395 = vmatpush1.bf16.msra.mxu0 0
      %396 = vmatprep.subr.bf16.mxu0 0
      %397 = vmatpush1.bf16.msra.mxu0 0
      %398 = vmatprep.subr.bf16.mxu0 0
      %399 = vmatpush1.bf16.msra.mxu0 0
      %400 = vmatprep.subr.bf16.mxu0 0
      %401 = vmatpush1.bf16.msra.mxu0 0
      %402 = vmatprep.subr.bf16.mxu0 0
      %403 = vmatpush1.bf16.msra.mxu0 0
      %404 = vmatprep.subr.bf16.mxu0 0
      %405 = vmatpush1.bf16.msra.mxu0 0
      %406 = vmatprep.subr.bf16.mxu0 0
      %407 = vmatpush1.bf16.msra.mxu0 0
      %408 = vmatprep.subr.bf16.mxu0 0
      %409 = vmatpush1.bf16.msra.mxu0 0
      %410 = vmatprep.subr.bf16.mxu0 0
      %411 = vmatpush1.bf16.msra.mxu0 0
      %412 = vmatprep.subr.bf16.mxu0 0
      %413 = vmatpush1.bf16.msra.mxu0 0
      %414 = vmatprep.subr.bf16.mxu0 0
      %415 = vmatpush1.bf16.msra.mxu0 0
      %416 = vmatprep.subr.bf16.mxu0 0
      %417 = vmatpush1.bf16.msra.mxu0 0
      %418 = vmatprep.subr.bf16.mxu0 0
      %419 = vmatpush1.bf16.msra.mxu0 0
      %420 = vmatprep.subr.bf16.mxu0 0
      %421 = vmatpush1.bf16.msra.mxu0 0
      %422 = vmatprep.subr.bf16.mxu0 0
      %423 = vmatpush1.bf16.msra.mxu0 0
      %424 = vmatprep.mubr.bf16.mxu0 0
      %425 = vmatmul.mubr.bf16.gmra.mrb[0].mxu0 %v340
      %v426 = vpop.f32.mrb[0].mxu0
      %v427 = vadd.f32 %v334, %v426
      %v428 = vpop.f32.mrb[0].mxu0
      %v429 = vpop.f32.mrb[0].mxu0
      %v430 = vpop.f32.mrb[0].mxu0
      %431 = vdwg.mxu0
      %s432 = scalar_lea.vmem %s1, 8
      %v433 = vld [vmem:[%s432] sm:$0xf]
      %434 = vrot.lane.b32.xlu0 %v222, 126
      %v435 = vpop.permute.xlu0 %434
      %436 = vrot.lane.b32.xlu0 %v230, 126
      %v437 = vpop.permute.xlu0 %436
      %438 = vrot.lane.b32.xlu0 %v229, 126
      %v439 = vpop.permute.xlu0 %438
      %440 = vrot.lane.b32.xlu0 %v231, 126
      %v441 = vpop.permute.xlu0 %440
      %vm442 = vcmask 1031168
      %v443 = vsel %vm442, %v435, %v437
      %v444 = vsel %vm442, %v437, %v439
      %v445 = vsel %vm442, %v439, %v441
      %v447 = vsel %vm244, %v433, 0
      %v450 = vsel %vm248, %v443, 0
      %v453 = vsel %vm248, %v444, 0
      %v456 = vsel %vm248, %v445, 0
      %458 = vmatprep.subr.bf16.mxu0 %v453
      %459 = vmatpush1.bf16.msra.mxu0 %v450
      %460 = vmatprep.subr.bf16.mxu0 0
      %461 = vmatpush1.bf16.msra.mxu0 0
      %462 = vmatprep.subr.bf16.mxu0 0
      %463 = vmatpush1.bf16.msra.mxu0 0
      %464 = vmatprep.subr.bf16.mxu0 0
      %465 = vmatpush1.bf16.msra.mxu0 0
      %466 = vmatprep.subr.bf16.mxu0 0
      %467 = vmatpush1.bf16.msra.mxu0 0
      %468 = vmatprep.subr.bf16.mxu0 0
      %469 = vmatpush1.bf16.msra.mxu0 0
      %470 = vmatprep.subr.bf16.mxu0 0
      %471 = vmatpush1.bf16.msra.mxu0 0
      %472 = vmatprep.subr.bf16.mxu0 0
      %473 = vmatpush1.bf16.msra.mxu0 0
      %474 = vmatprep.subr.bf16.mxu0 0
      %475 = vmatpush1.bf16.msra.mxu0 0
      %476 = vmatprep.subr.bf16.mxu0 0
      %477 = vmatpush1.bf16.msra.mxu0 0
      %478 = vmatprep.subr.bf16.mxu0 0
      %479 = vmatpush1.bf16.msra.mxu0 0
      %480 = vmatprep.subr.bf16.mxu0 0
      %481 = vmatpush1.bf16.msra.mxu0 0
      %482 = vmatprep.subr.bf16.mxu0 0
      %483 = vmatpush1.bf16.msra.mxu0 0
      %484 = vmatprep.subr.bf16.mxu0 0
      %485 = vmatpush1.bf16.msra.mxu0 0
      %486 = vmatprep.subr.bf16.mxu0 0
      %487 = vmatpush1.bf16.msra.mxu0 0
      %488 = vmatprep.subr.bf16.mxu0 0
      %489 = vmatpush1.bf16.msra.mxu0 0
      %490 = vmatprep.mubr.bf16.mxu0 0
      %491 = vmatmul.mubr.bf16.gmra.mrb[0].mxu0 %v447
      %v492 = vpop.f32.mrb[0].mxu0
      %v493 = vadd.f32 0.0, %v492
      %v494 = vpop.f32.mrb[0].mxu0
      %v495 = vadd.f32 0.0, %v494
      %v496 = vpop.f32.mrb[0].mxu0
      %v497 = vpop.f32.mrb[0].mxu0
      %498 = vdwg.mxu0
      %499 = vmatprep.subr.bf16.mxu0 0
      %500 = vmatpush1.bf16.msra.mxu0 %v456
      %501 = vmatprep.subr.bf16.mxu0 0
      %502 = vmatpush1.bf16.msra.mxu0 0
      %503 = vmatprep.subr.bf16.mxu0 0
      %504 = vmatpush1.bf16.msra.mxu0 0
      %505 = vmatprep.subr.bf16.mxu0 0
      %506 = vmatpush1.bf16.msra.mxu0 0
      %507 = vmatprep.subr.bf16.mxu0 0
      %508 = vmatpush1.bf16.msra.mxu0 0
      %509 = vmatprep.subr.bf16.mxu0 0
      %510 = vmatpush1.bf16.msra.mxu0 0
      %511 = vmatprep.subr.bf16.mxu0 0
      %512 = vmatpush1.bf16.msra.mxu0 0
      %513 = vmatprep.subr.bf16.mxu0 0
      %514 = vmatpush1.bf16.msra.mxu0 0
      %515 = vmatprep.subr.bf16.mxu0 0
      %516 = vmatpush1.bf16.msra.mxu0 0
      %517 = vmatprep.subr.bf16.mxu0 0
      %518 = vmatpush1.bf16.msra.mxu0 0
      %519 = vmatprep.subr.bf16.mxu0 0
      %520 = vmatpush1.bf16.msra.mxu0 0
      %521 = vmatprep.subr.bf16.mxu0 0
      %522 = vmatpush1.bf16.msra.mxu0 0
      %523 = vmatprep.subr.bf16.mxu0 0
      %524 = vmatpush1.bf16.msra.mxu0 0
      %525 = vmatprep.subr.bf16.mxu0 0
      %526 = vmatpush1.bf16.msra.mxu0 0
      %527 = vmatprep.subr.bf16.mxu0 0
      %528 = vmatpush1.bf16.msra.mxu0 0
      %529 = vmatprep.subr.bf16.mxu0 0
      %530 = vmatpush1.bf16.msra.mxu0 0
      %531 = vmatprep.mubr.bf16.mxu0 0
      %532 = vmatmul.mubr.bf16.gmra.mrb[0].mxu0 %v447
      %v533 = vpop.f32.mrb[0].mxu0
      %v534 = vadd.f32 0.0, %v533
      %v535 = vpop.f32.mrb[0].mxu0
      %v536 = vpop.f32.mrb[0].mxu0
      %v537 = vpop.f32.mrb[0].mxu0
      %538 = vdwg.mxu0
      %v539 = vadd.f32 %v386, %v493
      %v540 = vadd.f32 %v388, %v495
      %v541 = vadd.f32 %v427, %v534
      %s542 = scalar_lea.vmem %s1, 12
      %v543 = vld [vmem:[%s542] sm:$0xf]
      %544 = vrot.lane.b32.xlu0 %v222, 110
      %v545 = vpop.permute.xlu0 %544
      %546 = vrot.lane.b32.xlu0 %v230, 110
      %v547 = vpop.permute.xlu0 %546
      %548 = vrot.lane.b32.xlu0 %v229, 110
      %v549 = vpop.permute.xlu0 %548
      %550 = vrot.lane.b32.xlu0 %v231, 110
      %v551 = vpop.permute.xlu0 %550
      %vm552 = vcmask 900096
      %v553 = vsel %vm552, %v545, %v547
      %v554 = vsel %vm552, %v547, %v549
      %v555 = vsel %vm552, %v549, %v551
      %v557 = vsel %vm244, %v543, 0
      %v560 = vsel %vm248, %v553, 0
      %v563 = vsel %vm248, %v554, 0
      %v566 = vsel %vm248, %v555, 0
      %568 = vmatprep.subr.bf16.mxu0 %v563
      %569 = vmatpush1.bf16.msra.mxu0 %v560
      %570 = vmatprep.subr.bf16.mxu0 0
      %571 = vmatpush1.bf16.msra.mxu0 0
      %572 = vmatprep.subr.bf16.mxu0 0
      %573 = vmatpush1.bf16.msra.mxu0 0
      %574 = vmatprep.subr.bf16.mxu0 0
      %575 = vmatpush1.bf16.msra.mxu0 0
      %576 = vmatprep.subr.bf16.mxu0 0
      %577 = vmatpush1.bf16.msra.mxu0 0
      %578 = vmatprep.subr.bf16.mxu0 0
      %579 = vmatpush1.bf16.msra.mxu0 0
      %580 = vmatprep.subr.bf16.mxu0 0
      %581 = vmatpush1.bf16.msra.mxu0 0
      %582 = vmatprep.subr.bf16.mxu0 0
      %583 = vmatpush1.bf16.msra.mxu0 0
      %584 = vmatprep.subr.bf16.mxu0 0
      %585 = vmatpush1.bf16.msra.mxu0 0
      %586 = vmatprep.subr.bf16.mxu0 0
      %587 = vmatpush1.bf16.msra.mxu0 0
      %588 = vmatprep.subr.bf16.mxu0 0
      %589 = vmatpush1.bf16.msra.mxu0 0
      %590 = vmatprep.subr.bf16.mxu0 0
      %591 = vmatpush1.bf16.msra.mxu0 0
      %592 = vmatprep.subr.bf16.mxu0 0
      %593 = vmatpush1.bf16.msra.mxu0 0
      %594 = vmatprep.subr.bf16.mxu0 0
      %595 = vmatpush1.bf16.msra.mxu0 0
      %596 = vmatprep.subr.bf16.mxu0 0
      %597 = vmatpush1.bf16.msra.mxu0 0
      %598 = vmatprep.subr.bf16.mxu0 0
      %599 = vmatpush1.bf16.msra.mxu0 0
      %600 = vmatprep.mubr.bf16.mxu0 0
      %601 = vmatmul.mubr.bf16.gmra.mrb[0].mxu0 %v557
      %v602 = vpop.f32.mrb[0].mxu0
      %v603 = vadd.f32 0.0, %v602
      %v604 = vpop.f32.mrb[0].mxu0
      %v605 = vadd.f32 0.0, %v604
      %v606 = vpop.f32.mrb[0].mxu0
      %v607 = vpop.f32.mrb[0].mxu0
      %608 = vdwg.mxu0
      %609 = vmatprep.subr.bf16.mxu0 0
      %610 = vmatpush1.bf16.msra.mxu0 %v566
      %611 = vmatprep.subr.bf16.mxu0 0
      %612 = vmatpush1.bf16.msra.mxu0 0
      %613 = vmatprep.subr.bf16.mxu0 0
      %614 = vmatpush1.bf16.msra.mxu0 0
      %615 = vmatprep.subr.bf16.mxu0 0
      %616 = vmatpush1.bf16.msra.mxu0 0
      %617 = vmatprep.subr.bf16.mxu0 0
      %618 = vmatpush1.bf16.msra.mxu0 0
      %619 = vmatprep.subr.bf16.mxu0 0
      %620 = vmatpush1.bf16.msra.mxu0 0
      %621 = vmatprep.subr.bf16.mxu0 0
      %622 = vmatpush1.bf16.msra.mxu0 0
      %623 = vmatprep.subr.bf16.mxu0 0
      %624 = vmatpush1.bf16.msra.mxu0 0
      %625 = vmatprep.subr.bf16.mxu0 0
      %626 = vmatpush1.bf16.msra.mxu0 0
      %627 = vmatprep.subr.bf16.mxu0 0
      %628 = vmatpush1.bf16.msra.mxu0 0
      %629 = vmatprep.subr.bf16.mxu0 0
      %630 = vmatpush1.bf16.msra.mxu0 0
      %631 = vmatprep.subr.bf16.mxu0 0
      %632 = vmatpush1.bf16.msra.mxu0 0
      %633 = vmatprep.subr.bf16.mxu0 0
      %634 = vmatpush1.bf16.msra.mxu0 0
      %635 = vmatprep.subr.bf16.mxu0 0
      %636 = vmatpush1.bf16.msra.mxu0 0
      %637 = vmatprep.subr.bf16.mxu0 0
      %638 = vmatpush1.bf16.msra.mxu0 0
      %639 = vmatprep.subr.bf16.mxu0 0
      %640 = vmatpush1.bf16.msra.mxu0 0
      %641 = vmatprep.mubr.bf16.mxu0 0
      %642 = vmatmul.mubr.bf16.gmra.mrb[0].mxu0 %v557
      %v643 = vpop.f32.mrb[0].mxu0
      %v644 = vadd.f32 0.0, %v643
      %v645 = vpop.f32.mrb[0].mxu0
      %v646 = vpop.f32.mrb[0].mxu0
      %v647 = vpop.f32.mrb[0].mxu0
      %648 = vdwg.mxu0
      %v649 = vadd.f32 %v539, %v603
      %v650 = vadd.f32 %v540, %v605
      %v651 = vadd.f32 %v541, %v644
      %s652 = scalar_lea.vmem %s1, 16
      %v653 = vld [vmem:[%s652] sm:$0xf]
      %654 = vrot.lane.b32.xlu0 %v222, 109
      %v655 = vpop.permute.xlu0 %654
      %656 = vrot.lane.b32.xlu0 %v230, 109
      %v657 = vpop.permute.xlu0 %656
      %658 = vrot.lane.b32.xlu0 %v229, 109
      %v659 = vpop.permute.xlu0 %658
      %660 = vrot.lane.b32.xlu0 %v231, 109
      %v661 = vpop.permute.xlu0 %660
      %vm662 = vcmask 891904
      %v663 = vsel %vm662, %v655, %v657
      %v664 = vsel %vm662, %v657, %v659
      %v665 = vsel %vm662, %v659, %v661
      %v667 = vsel %vm244, %v653, 0
      %v670 = vsel %vm248, %v663, 0
      %v673 = vsel %vm248, %v664, 0
      %v676 = vsel %vm248, %v665, 0
      %678 = vmatprep.subr.bf16.mxu0 %v673
      %679 = vmatpush1.bf16.msra.mxu0 %v670
      %680 = vmatprep.subr.bf16.mxu0 0
      %681 = vmatpush1.bf16.msra.mxu0 0
      %682 = vmatprep.subr.bf16.mxu0 0
      %683 = vmatpush1.bf16.msra.mxu0 0
      %684 = vmatprep.subr.bf16.mxu0 0
      %685 = vmatpush1.bf16.msra.mxu0 0
      %686 = vmatprep.subr.bf16.mxu0 0
      %687 = vmatpush1.bf16.msra.mxu0 0
      %688 = vmatprep.subr.bf16.mxu0 0
      %689 = vmatpush1.bf16.msra.mxu0 0
      %690 = vmatprep.subr.bf16.mxu0 0
      %691 = vmatpush1.bf16.msra.mxu0 0
      %692 = vmatprep.subr.bf16.mxu0 0
      %693 = vmatpush1.bf16.msra.mxu0 0
      %694 = vmatprep.subr.bf16.mxu0 0
      %695 = vmatpush1.bf16.msra.mxu0 0
      %696 = vmatprep.subr.bf16.mxu0 0
      %697 = vmatpush1.bf16.msra.mxu0 0
      %698 = vmatprep.subr.bf16.mxu0 0
      %699 = vmatpush1.bf16.msra.mxu0 0
      %700 = vmatprep.subr.bf16.mxu0 0
      %701 = vmatpush1.bf16.msra.mxu0 0
      %702 = vmatprep.subr.bf16.mxu0 0
      %703 = vmatpush1.bf16.msra.mxu0 0
      %704 = vmatprep.subr.bf16.mxu0 0
      %705 = vmatpush1.bf16.msra.mxu0 0
      %706 = vmatprep.subr.bf16.mxu0 0
      %707 = vmatpush1.bf16.msra.mxu0 0
      %708 = vmatprep.subr.bf16.mxu0 0
      %709 = vmatpush1.bf16.msra.mxu0 0
      %710 = vmatprep.mubr.bf16.mxu0 0
      %711 = vmatmul.mubr.bf16.gmra.mrb[0].mxu0 %v667
      %v712 = vpop.f32.mrb[0].mxu0
      %v713 = vadd.f32 0.0, %v712
      %v714 = vpop.f32.mrb[0].mxu0
      %v715 = vadd.f32 0.0, %v714
      %v716 = vpop.f32.mrb[0].mxu0
      %v717 = vpop.f32.mrb[0].mxu0
      %718 = vdwg.mxu0
      %719 = vmatprep.subr.bf16.mxu0 0
      %720 = vmatpush1.bf16.msra.mxu0 %v676
      %721 = vmatprep.subr.bf16.mxu0 0
      %722 = vmatpush1.bf16.msra.mxu0 0
      %723 = vmatprep.subr.bf16.mxu0 0
      %724 = vmatpush1.bf16.msra.mxu0 0
      %725 = vmatprep.subr.bf16.mxu0 0
      %726 = vmatpush1.bf16.msra.mxu0 0
      %727 = vmatprep.subr.bf16.mxu0 0
      %728 = vmatpush1.bf16.msra.mxu0 0
      %729 = vmatprep.subr.bf16.mxu0 0
      %730 = vmatpush1.bf16.msra.mxu0 0
      %731 = vmatprep.subr.bf16.mxu0 0
      %732 = vmatpush1.bf16.msra.mxu0 0
      %733 = vmatprep.subr.bf16.mxu0 0
      %734 = vmatpush1.bf16.msra.mxu0 0
      %735 = vmatprep.subr.bf16.mxu0 0
      %736 = vmatpush1.bf16.msra.mxu0 0
      %737 = vmatprep.subr.bf16.mxu0 0
      %738 = vmatpush1.bf16.msra.mxu0 0
      %739 = vmatprep.subr.bf16.mxu0 0
      %740 = vmatpush1.bf16.msra.mxu0 0
      %741 = vmatprep.subr.bf16.mxu0 0
      %742 = vmatpush1.bf16.msra.mxu0 0
      %743 = vmatprep.subr.bf16.mxu0 0
      %744 = vmatpush1.bf16.msra.mxu0 0
      %745 = vmatprep.subr.bf16.mxu0 0
      %746 = vmatpush1.bf16.msra.mxu0 0
      %747 = vmatprep.subr.bf16.mxu0 0
      %748 = vmatpush1.bf16.msra.mxu0 0
      %749 = vmatprep.subr.bf16.mxu0 0
      %750 = vmatpush1.bf16.msra.mxu0 0
      %751 = vmatprep.mubr.bf16.mxu0 0
      %752 = vmatmul.mubr.bf16.gmra.mrb[0].mxu0 %v667
      %v753 = vpop.f32.mrb[0].mxu0
      %v754 = vadd.f32 0.0, %v753
      %v755 = vpop.f32.mrb[0].mxu0
      %v756 = vpop.f32.mrb[0].mxu0
      %v757 = vpop.f32.mrb[0].mxu0
      %758 = vdwg.mxu0
      %v759 = vadd.f32 %v649, %v713
      %v760 = vadd.f32 %v650, %v715
      %v761 = vadd.f32 %v651, %v754
      %s762 = scalar_lea.vmem %s1, 20
      %v763 = vld [vmem:[%s762] sm:$0xf]
      %764 = vrot.lane.b32.xlu0 %v222, 108
      %v765 = vpop.permute.xlu0 %764
      %766 = vrot.lane.b32.xlu0 %v230, 108
      %v767 = vpop.permute.xlu0 %766
      %768 = vrot.lane.b32.xlu0 %v229, 108
      %v769 = vpop.permute.xlu0 %768
      %770 = vrot.lane.b32.xlu0 %v231, 108
      %v771 = vpop.permute.xlu0 %770
      %vm772 = vcmask 883712
      %v773 = vsel %vm772, %v765, %v767
      %v774 = vsel %vm772, %v767, %v769
      %v775 = vsel %vm772, %v769, %v771
      %v777 = vsel %vm244, %v763, 0
      %v780 = vsel %vm248, %v773, 0
      %v783 = vsel %vm248, %v774, 0
      %v786 = vsel %vm248, %v775, 0
      %788 = vmatprep.subr.bf16.mxu0 %v783
      %789 = vmatpush1.bf16.msra.mxu0 %v780
      %790 = vmatprep.subr.bf16.mxu0 0
      %791 = vmatpush1.bf16.msra.mxu0 0
      %792 = vmatprep.subr.bf16.mxu0 0
      %793 = vmatpush1.bf16.msra.mxu0 0
      %794 = vmatprep.subr.bf16.mxu0 0
      %795 = vmatpush1.bf16.msra.mxu0 0
      %796 = vmatprep.subr.bf16.mxu0 0
      %797 = vmatpush1.bf16.msra.mxu0 0
      %798 = vmatprep.subr.bf16.mxu0 0
      %799 = vmatpush1.bf16.msra.mxu0 0
      %800 = vmatprep.subr.bf16.mxu0 0
      %801 = vmatpush1.bf16.msra.mxu0 0
      %802 = vmatprep.subr.bf16.mxu0 0
      %803 = vmatpush1.bf16.msra.mxu0 0
      %804 = vmatprep.subr.bf16.mxu0 0
      %805 = vmatpush1.bf16.msra.mxu0 0
      %806 = vmatprep.subr.bf16.mxu0 0
      %807 = vmatpush1.bf16.msra.mxu0 0
      %808 = vmatprep.subr.bf16.mxu0 0
      %809 = vmatpush1.bf16.msra.mxu0 0
      %810 = vmatprep.subr.bf16.mxu0 0
      %811 = vmatpush1.bf16.msra.mxu0 0
      %812 = vmatprep.subr.bf16.mxu0 0
      %813 = vmatpush1.bf16.msra.mxu0 0
      %814 = vmatprep.subr.bf16.mxu0 0
      %815 = vmatpush1.bf16.msra.mxu0 0
      %816 = vmatprep.subr.bf16.mxu0 0
      %817 = vmatpush1.bf16.msra.mxu0 0
      %818 = vmatprep.subr.bf16.mxu0 0
      %819 = vmatpush1.bf16.msra.mxu0 0
      %820 = vmatprep.mubr.bf16.mxu0 0
      %821 = vmatmul.mubr.bf16.gmra.mrb[0].mxu0 %v777
      %v822 = vpop.f32.mrb[0].mxu0
      %v823 = vadd.f32 0.0, %v822
      %v824 = vpop.f32.mrb[0].mxu0
      %v825 = vadd.f32 0.0, %v824
      %v826 = vpop.f32.mrb[0].mxu0
      %v827 = vpop.f32.mrb[0].mxu0
      %828 = vdwg.mxu0
      %829 = vmatprep.subr.bf16.mxu0 0
      %830 = vmatpush1.bf16.msra.mxu0 %v786
      %831 = vmatprep.subr.bf16.mxu0 0
      %832 = vmatpush1.bf16.msra.mxu0 0
      %833 = vmatprep.subr.bf16.mxu0 0
      %834 = vmatpush1.bf16.msra.mxu0 0
      %835 = vmatprep.subr.bf16.mxu0 0
      %836 = vmatpush1.bf16.msra.mxu0 0
      %837 = vmatprep.subr.bf16.mxu0 0
      %838 = vmatpush1.bf16.msra.mxu0 0
      %839 = vmatprep.subr.bf16.mxu0 0
      %840 = vmatpush1.bf16.msra.mxu0 0
      %841 = vmatprep.subr.bf16.mxu0 0
      %842 = vmatpush1.bf16.msra.mxu0 0
      %843 = vmatprep.subr.bf16.mxu0 0
      %844 = vmatpush1.bf16.msra.mxu0 0
      %845 = vmatprep.subr.bf16.mxu0 0
      %846 = vmatpush1.bf16.msra.mxu0 0
      %847 = vmatprep.subr.bf16.mxu0 0
      %848 = vmatpush1.bf16.msra.mxu0 0
      %849 = vmatprep.subr.bf16.mxu0 0
      %850 = vmatpush1.bf16.msra.mxu0 0
      %851 = vmatprep.subr.bf16.mxu0 0
      %852 = vmatpush1.bf16.msra.mxu0 0
      %853 = vmatprep.subr.bf16.mxu0 0
      %854 = vmatpush1.bf16.msra.mxu0 0
      %855 = vmatprep.subr.bf16.mxu0 0
      %856 = vmatpush1.bf16.msra.mxu0 0
      %857 = vmatprep.subr.bf16.mxu0 0
      %858 = vmatpush1.bf16.msra.mxu0 0
      %859 = vmatprep.subr.bf16.mxu0 0
      %860 = vmatpush1.bf16.msra.mxu0 0
      %861 = vmatprep.mubr.bf16.mxu0 0
      %862 = vmatmul.mubr.bf16.gmra.mrb[0].mxu0 %v777
      %v863 = vpop.f32.mrb[0].mxu0
      %v864 = vadd.f32 0.0, %v863
      %v865 = vpop.f32.mrb[0].mxu0
      %v866 = vpop.f32.mrb[0].mxu0
      %v867 = vpop.f32.mrb[0].mxu0
      %868 = vdwg.mxu0
      %v869 = vadd.f32 %v759, %v823
      %v870 = vadd.f32 %v760, %v825
      %v871 = vadd.f32 %v761, %v864
      %s872 = scalar_lea.vmem %s1, 24
      %v873 = vld [vmem:[%s872] sm:$0xf]
      %874 = vrot.lane.b32.xlu0 %v222, 92
      %v875 = vpop.permute.xlu0 %874
      %876 = vrot.lane.b32.xlu0 %v230, 92
      %v877 = vpop.permute.xlu0 %876
      %878 = vrot.lane.b32.xlu0 %v229, 92
      %v879 = vpop.permute.xlu0 %878
      %880 = vrot.lane.b32.xlu0 %v231, 92
      %v881 = vpop.permute.xlu0 %880
      %vm882 = vcmask 752640
      %v883 = vsel %vm882, %v875, %v877
      %v884 = vsel %vm882, %v877, %v879
      %v885 = vsel %vm882, %v879, %v881
      %v887 = vsel %vm244, %v873, 0
      %v890 = vsel %vm248, %v883, 0
      %v893 = vsel %vm248, %v884, 0
      %v896 = vsel %vm248, %v885, 0
      %898 = vmatprep.subr.bf16.mxu0 %v893
      %899 = vmatpush1.bf16.msra.mxu0 %v890
      %900 = vmatprep.subr.bf16.mxu0 0
      %901 = vmatpush1.bf16.msra.mxu0 0
      %902 = vmatprep.subr.bf16.mxu0 0
      %903 = vmatpush1.bf16.msra.mxu0 0
      %904 = vmatprep.subr.bf16.mxu0 0
      %905 = vmatpush1.bf16.msra.mxu0 0
      %906 = vmatprep.subr.bf16.mxu0 0
      %907 = vmatpush1.bf16.msra.mxu0 0
      %908 = vmatprep.subr.bf16.mxu0 0
      %909 = vmatpush1.bf16.msra.mxu0 0
      %910 = vmatprep.subr.bf16.mxu0 0
      %911 = vmatpush1.bf16.msra.mxu0 0
      %912 = vmatprep.subr.bf16.mxu0 0
      %913 = vmatpush1.bf16.msra.mxu0 0
      %914 = vmatprep.subr.bf16.mxu0 0
      %915 = vmatpush1.bf16.msra.mxu0 0
      %916 = vmatprep.subr.bf16.mxu0 0
      %917 = vmatpush1.bf16.msra.mxu0 0
      %918 = vmatprep.subr.bf16.mxu0 0
      %919 = vmatpush1.bf16.msra.mxu0 0
      %920 = vmatprep.subr.bf16.mxu0 0
      %921 = vmatpush1.bf16.msra.mxu0 0
      %922 = vmatprep.subr.bf16.mxu0 0
      %923 = vmatpush1.bf16.msra.mxu0 0
      %924 = vmatprep.subr.bf16.mxu0 0
      %925 = vmatpush1.bf16.msra.mxu0 0
      %926 = vmatprep.subr.bf16.mxu0 0
      %927 = vmatpush1.bf16.msra.mxu0 0
      %928 = vmatprep.subr.bf16.mxu0 0
      %929 = vmatpush1.bf16.msra.mxu0 0
      %930 = vmatprep.mubr.bf16.mxu0 0
      %931 = vmatmul.mubr.bf16.gmra.mrb[0].mxu0 %v887
      %v932 = vpop.f32.mrb[0].mxu0
      %v933 = vadd.f32 0.0, %v932
      %v934 = vpop.f32.mrb[0].mxu0
      %v935 = vadd.f32 0.0, %v934
      %v936 = vpop.f32.mrb[0].mxu0
      %v937 = vpop.f32.mrb[0].mxu0
      %938 = vdwg.mxu0
      %939 = vmatprep.subr.bf16.mxu0 0
      %940 = vmatpush1.bf16.msra.mxu0 %v896
      %941 = vmatprep.subr.bf16.mxu0 0
      %942 = vmatpush1.bf16.msra.mxu0 0
      %943 = vmatprep.subr.bf16.mxu0 0
      %944 = vmatpush1.bf16.msra.mxu0 0
      %945 = vmatprep.subr.bf16.mxu0 0
      %946 = vmatpush1.bf16.msra.mxu0 0
      %947 = vmatprep.subr.bf16.mxu0 0
      %948 = vmatpush1.bf16.msra.mxu0 0
      %949 = vmatprep.subr.bf16.mxu0 0
      %950 = vmatpush1.bf16.msra.mxu0 0
      %951 = vmatprep.subr.bf16.mxu0 0
      %952 = vmatpush1.bf16.msra.mxu0 0
      %953 = vmatprep.subr.bf16.mxu0 0
      %954 = vmatpush1.bf16.msra.mxu0 0
      %955 = vmatprep.subr.bf16.mxu0 0
      %956 = vmatpush1.bf16.msra.mxu0 0
      %957 = vmatprep.subr.bf16.mxu0 0
      %958 = vmatpush1.bf16.msra.mxu0 0
      %959 = vmatprep.subr.bf16.mxu0 0
      %960 = vmatpush1.bf16.msra.mxu0 0
      %961 = vmatprep.subr.bf16.mxu0 0
      %962 = vmatpush1.bf16.msra.mxu0 0
      %963 = vmatprep.subr.bf16.mxu0 0
      %964 = vmatpush1.bf16.msra.mxu0 0
      %965 = vmatprep.subr.bf16.mxu0 0
      %966 = vmatpush1.bf16.msra.mxu0 0
      %967 = vmatprep.subr.bf16.mxu0 0
      %968 = vmatpush1.bf16.msra.mxu0 0
      %969 = vmatprep.subr.bf16.mxu0 0
      %970 = vmatpush1.bf16.msra.mxu0 0
      %971 = vmatprep.mubr.bf16.mxu0 0
      %972 = vmatmul.mubr.bf16.gmra.mrb[0].mxu0 %v887
      %v973 = vpop.f32.mrb[0].mxu0
      %v974 = vadd.f32 0.0, %v973
      %v975 = vpop.f32.mrb[0].mxu0
      %v976 = vpop.f32.mrb[0].mxu0
      %v977 = vpop.f32.mrb[0].mxu0
      %978 = vdwg.mxu0
      %v979 = vadd.f32 %v869, %v933
      %v980 = vadd.f32 %v870, %v935
      %v981 = vadd.f32 %v871, %v974
      %s982 = scalar_lea.vmem %s1, 28
      %v983 = vld [vmem:[%s982] sm:$0xf]
      %984 = vrot.lane.b32.xlu0 %v222, 91
      %v985 = vpop.permute.xlu0 %984
      %986 = vrot.lane.b32.xlu0 %v230, 91
      %v987 = vpop.permute.xlu0 %986
      %988 = vrot.lane.b32.xlu0 %v229, 91
      %v989 = vpop.permute.xlu0 %988
      %990 = vrot.lane.b32.xlu0 %v231, 91
      %v991 = vpop.permute.xlu0 %990
      %vm992 = vcmask 744448
      %v993 = vsel %vm992, %v985, %v987
      %v994 = vsel %vm992, %v987, %v989
      %v995 = vsel %vm992, %v989, %v991
      %v997 = vsel %vm244, %v983, 0
      %v1000 = vsel %vm248, %v993, 0
      %v1003 = vsel %vm248, %v994, 0
      %v1006 = vsel %vm248, %v995, 0
      %1008 = vmatprep.subr.bf16.mxu0 %v1003
      %1009 = vmatpush1.bf16.msra.mxu0 %v1000
      %1010 = vmatprep.subr.bf16.mxu0 0
      %1011 = vmatpush1.bf16.msra.mxu0 0
      %1012 = vmatprep.subr.bf16.mxu0 0
      %1013 = vmatpush1.bf16.msra.mxu0 0
      %1014 = vmatprep.subr.bf16.mxu0 0
      %1015 = vmatpush1.bf16.msra.mxu0 0
      %1016 = vmatprep.subr.bf16.mxu0 0
      %1017 = vmatpush1.bf16.msra.mxu0 0
      %1018 = vmatprep.subr.bf16.mxu0 0
      %1019 = vmatpush1.bf16.msra.mxu0 0
      %1020 = vmatprep.subr.bf16.mxu0 0
      %1021 = vmatpush1.bf16.msra.mxu0 0
      %1022 = vmatprep.subr.bf16.mxu0 0
      %1023 = vmatpush1.bf16.msra.mxu0 0
      %1024 = vmatprep.subr.bf16.mxu0 0
      %1025 = vmatpush1.bf16.msra.mxu0 0
      %1026 = vmatprep.subr.bf16.mxu0 0
      %1027 = vmatpush1.bf16.msra.mxu0 0
      %1028 = vmatprep.subr.bf16.mxu0 0
      %1029 = vmatpush1.bf16.msra.mxu0 0
      %1030 = vmatprep.subr.bf16.mxu0 0
      %1031 = vmatpush1.bf16.msra.mxu0 0
      %1032 = vmatprep.subr.bf16.mxu0 0
      %1033 = vmatpush1.bf16.msra.mxu0 0
      %1034 = vmatprep.subr.bf16.mxu0 0
      %1035 = vmatpush1.bf16.msra.mxu0 0
      %1036 = vmatprep.subr.bf16.mxu0 0
      %1037 = vmatpush1.bf16.msra.mxu0 0
      %1038 = vmatprep.subr.bf16.mxu0 0
      %1039 = vmatpush1.bf16.msra.mxu0 0
      %1040 = vmatprep.mubr.bf16.mxu0 0
      %1041 = vmatmul.mubr.bf16.gmra.mrb[0].mxu0 %v997
      %v1042 = vpop.f32.mrb[0].mxu0
      %v1043 = vadd.f32 0.0, %v1042
      %v1044 = vpop.f32.mrb[0].mxu0
      %v1045 = vadd.f32 0.0, %v1044
      %v1046 = vpop.f32.mrb[0].mxu0
      %v1047 = vpop.f32.mrb[0].mxu0
      %1048 = vdwg.mxu0
      %1049 = vmatprep.subr.bf16.mxu0 0
      %1050 = vmatpush1.bf16.msra.mxu0 %v1006
      %1051 = vmatprep.subr.bf16.mxu0 0
      %1052 = vmatpush1.bf16.msra.mxu0 0
      %1053 = vmatprep.subr.bf16.mxu0 0
      %1054 = vmatpush1.bf16.msra.mxu0 0
      %1055 = vmatprep.subr.bf16.mxu0 0
      %1056 = vmatpush1.bf16.msra.mxu0 0
      %1057 = vmatprep.subr.bf16.mxu0 0
      %1058 = vmatpush1.bf16.msra.mxu0 0
      %1059 = vmatprep.subr.bf16.mxu0 0
      %1060 = vmatpush1.bf16.msra.mxu0 0
      %1061 = vmatprep.subr.bf16.mxu0 0
      %1062 = vmatpush1.bf16.msra.mxu0 0
      %1063 = vmatprep.subr.bf16.mxu0 0
      %1064 = vmatpush1.bf16.msra.mxu0 0
      %1065 = vmatprep.subr.bf16.mxu0 0
      %1066 = vmatpush1.bf16.msra.mxu0 0
      %1067 = vmatprep.subr.bf16.mxu0 0
      %1068 = vmatpush1.bf16.msra.mxu0 0
      %1069 = vmatprep.subr.bf16.mxu0 0
      %1070 = vmatpush1.bf16.msra.mxu0 0
      %1071 = vmatprep.subr.bf16.mxu0 0
      %1072 = vmatpush1.bf16.msra.mxu0 0
      %1073 = vmatprep.subr.bf16.mxu0 0
      %1074 = vmatpush1.bf16.msra.mxu0 0
      %1075 = vmatprep.subr.bf16.mxu0 0
      %1076 = vmatpush1.bf16.msra.mxu0 0
      %1077 = vmatprep.subr.bf16.mxu0 0
      %1078 = vmatpush1.bf16.msra.mxu0 0
      %1079 = vmatprep.subr.bf16.mxu0 0
      %1080 = vmatpush1.bf16.msra.mxu0 0
      %1081 = vmatprep.mubr.bf16.mxu0 0
      %1082 = vmatmul.mubr.bf16.gmra.mrb[0].mxu0 %v997
      %v1083 = vpop.f32.mrb[0].mxu0
      %v1084 = vadd.f32 0.0, %v1083
      %v1085 = vpop.f32.mrb[0].mxu0
      %v1086 = vpop.f32.mrb[0].mxu0
      %v1087 = vpop.f32.mrb[0].mxu0
      %1088 = vdwg.mxu0
      %v1089 = vadd.f32 %v979, %v1043
      %v1090 = vadd.f32 %v980, %v1045
      %v1091 = vadd.f32 %v981, %v1084
      %s1092 = scalar_lea.vmem %s1, 32
      %v1093 = vld [vmem:[%s1092] sm:$0xf]
      %1094 = vrot.lane.b32.xlu0 %v222, 90
      %v1095 = vpop.permute.xlu0 %1094
      %1096 = vrot.lane.b32.xlu0 %v230, 90
      %v1097 = vpop.permute.xlu0 %1096
      %1098 = vrot.lane.b32.xlu0 %v229, 90
      %v1099 = vpop.permute.xlu0 %1098
      %1100 = vrot.lane.b32.xlu0 %v231, 90
      %v1101 = vpop.permute.xlu0 %1100
      %vm1102 = vcmask 736256
      %v1103 = vsel %vm1102, %v1095, %v1097
      %v1104 = vsel %vm1102, %v1097, %v1099
      %v1105 = vsel %vm1102, %v1099, %v1101
      %v1107 = vsel %vm244, %v1093, 0
      %v1110 = vsel %vm248, %v1103, 0
      %v1113 = vsel %vm248, %v1104, 0
      %v1116 = vsel %vm248, %v1105, 0
      %1118 = vmatprep.subr.bf16.mxu0 %v1113
      %1119 = vmatpush1.bf16.msra.mxu0 %v1110
      %1120 = vmatprep.subr.bf16.mxu0 0
      %1121 = vmatpush1.bf16.msra.mxu0 0
      %1122 = vmatprep.subr.bf16.mxu0 0
      %1123 = vmatpush1.bf16.msra.mxu0 0
      %1124 = vmatprep.subr.bf16.mxu0 0
      %1125 = vmatpush1.bf16.msra.mxu0 0
      %1126 = vmatprep.subr.bf16.mxu0 0
      %1127 = vmatpush1.bf16.msra.mxu0 0
      %1128 = vmatprep.subr.bf16.mxu0 0
      %1129 = vmatpush1.bf16.msra.mxu0 0
      %1130 = vmatprep.subr.bf16.mxu0 0
      %1131 = vmatpush1.bf16.msra.mxu0 0
      %1132 = vmatprep.subr.bf16.mxu0 0
      %1133 = vmatpush1.bf16.msra.mxu0 0
      %1134 = vmatprep.subr.bf16.mxu0 0
      %1135 = vmatpush1.bf16.msra.mxu0 0
      %1136 = vmatprep.subr.bf16.mxu0 0
      %1137 = vmatpush1.bf16.msra.mxu0 0
      %1138 = vmatprep.subr.bf16.mxu0 0
      %1139 = vmatpush1.bf16.msra.mxu0 0
      %1140 = vmatprep.subr.bf16.mxu0 0
      %1141 = vmatpush1.bf16.msra.mxu0 0
      %1142 = vmatprep.subr.bf16.mxu0 0
      %1143 = vmatpush1.bf16.msra.mxu0 0
      %1144 = vmatprep.subr.bf16.mxu0 0
      %1145 = vmatpush1.bf16.msra.mxu0 0
      %1146 = vmatprep.subr.bf16.mxu0 0
      %1147 = vmatpush1.bf16.msra.mxu0 0
      %1148 = vmatprep.subr.bf16.mxu0 0
      %1149 = vmatpush1.bf16.msra.mxu0 0
      %1150 = vmatprep.mubr.bf16.mxu0 0
      %1151 = vmatmul.mubr.bf16.gmra.mrb[0].mxu0 %v1107
      %v1152 = vpop.f32.mrb[0].mxu0
      %v1153 = vadd.f32 0.0, %v1152
      %v1154 = vpop.f32.mrb[0].mxu0
      %v1155 = vadd.f32 0.0, %v1154
      %v1156 = vpop.f32.mrb[0].mxu0
      %v1157 = vpop.f32.mrb[0].mxu0
      %1158 = vdwg.mxu0
      %1159 = vmatprep.subr.bf16.mxu0 0
      %1160 = vmatpush1.bf16.msra.mxu0 %v1116
      %1161 = vmatprep.subr.bf16.mxu0 0
      %1162 = vmatpush1.bf16.msra.mxu0 0
      %1163 = vmatprep.subr.bf16.mxu0 0
      %1164 = vmatpush1.bf16.msra.mxu0 0
      %1165 = vmatprep.subr.bf16.mxu0 0
      %1166 = vmatpush1.bf16.msra.mxu0 0
      %1167 = vmatprep.subr.bf16.mxu0 0
      %1168 = vmatpush1.bf16.msra.mxu0 0
      %1169 = vmatprep.subr.bf16.mxu0 0
      %1170 = vmatpush1.bf16.msra.mxu0 0
      %1171 = vmatprep.subr.bf16.mxu0 0
      %1172 = vmatpush1.bf16.msra.mxu0 0
      %1173 = vmatprep.subr.bf16.mxu0 0
      %1174 = vmatpush1.bf16.msra.mxu0 0
      %1175 = vmatprep.subr.bf16.mxu0 0
      %1176 = vmatpush1.bf16.msra.mxu0 0
      %1177 = vmatprep.subr.bf16.mxu0 0
      %1178 = vmatpush1.bf16.msra.mxu0 0
      %1179 = vmatprep.subr.bf16.mxu0 0
      %1180 = vmatpush1.bf16.msra.mxu0 0
      %1181 = vmatprep.subr.bf16.mxu0 0
      %1182 = vmatpush1.bf16.msra.mxu0 0
      %1183 = vmatprep.subr.bf16.mxu0 0
      %1184 = vmatpush1.bf16.msra.mxu0 0
      %1185 = vmatprep.subr.bf16.mxu0 0
      %1186 = vmatpush1.bf16.msra.mxu0 0
      %1187 = vmatprep.subr.bf16.mxu0 0
      %1188 = vmatpush1.bf16.msra.mxu0 0
      %1189 = vmatprep.subr.bf16.mxu0 0
      %1190 = vmatpush1.bf16.msra.mxu0 0
      %1191 = vmatprep.mubr.bf16.mxu0 0
      %1192 = vmatmul.mubr.bf16.gmra.mrb[0].mxu0 %v1107
      %v1193 = vpop.f32.mrb[0].mxu0
      %v1194 = vadd.f32 0.0, %v1193
      %v1195 = vpop.f32.mrb[0].mxu0
      %v1196 = vpop.f32.mrb[0].mxu0
      %v1197 = vpop.f32.mrb[0].mxu0
      %1198 = vdwg.mxu0
      %v1199 = vadd.f32 %v1089, %v1153
      %v1200 = vadd.f32 %v1090, %v1155
      %v1201 = vadd.f32 %v1091, %v1194
      %1202 = vst [vmem:[%s204] sm:$0xff] %v1199
      %1203 = vst [vmem:[%s204 + $0x8] sm:$0xff] %v1200
      %1204 = vst [vmem:[%s204 + $0x10] sm:$0xff] %v1201
      %v1205 = vld [vmem:[%s2] sm:$0x7]
      %v1207 = vlaneseq
      %v1208 = vshrl.u32 %v1207, 7
      %v1209 = vsub.s32 0, %v1208
      %v1210 = vrot.slane %v1205, %v1209
      %v1211 = vlaneseq
      %v1212 = vshrl.u32 %v1211, 7
      %v1213 = vsub.s32 1, %v1212
      %v1214 = vrot.slane %v1205, %v1213
      %v1215 = vlaneseq
      %v1216 = vshrl.u32 %v1215, 7
      %v1217 = vsub.s32 2, %v1216
      %v1218 = vrot.slane %v1205, %v1217
      %v1222 = vmul.f32 %v1199, %v1210
      %v1223 = vmul.f32 %v1200, %v1214
      %v1224 = vmul.f32 %v1201, %v1218
      %v1225 = vadd.f32 %v1222, %v1223
      %v1226 = vadd.f32 %v1225, %v1224
      %1227 = vadd.xlane.f32.xlu0 %v1226
      %v1228 = vpop.xlane.xlu0 %1227
      %vm1229 = vcmask 7168
      %1230 = vst.msk [vmem:[%s208] sm:$0xff] %vm1229, %v1228
      %v1231 = vmul.f32 %v1222, %v1199
      %v1232 = vmul.f32 %v1223, %v1200
      %v1233 = vmul.f32 %v1224, %v1201
      %v1234 = vadd.f32 %v1231, %v1232
      %v1235 = vadd.f32 %v1234, %v1233
      %1236 = vadd.xlane.f32.xlu0 %v1235
      %v1237 = vpop.xlane.xlu0 %1236
      %vm1238 = vcmask 15368
      %1239 = vst.msk [vmem:[%s208] sm:$0xff] %vm1238, %v1237
      %p1240 = scmp.lt.s32.totalorder %s16, 1
      %s1241 = scalar_select %p1240, %s16, 1
      %s1242 = smul.addr %s1241, 3
      %s1243 = smul.addr %s1242, 8
      %s1244 = scalar_lea.vmem %s3, %s1243
      %p1245 = scmp.lt.s32.totalorder %s16, 1
      %s1246 = scalar_select %p1245, %s16, 1
      %s1247 = smul.addr %s1246, 8
      %s1248 = scalar_lea.vmem %s4, %s1247
      // Predicated region
      $region33: #{conv_block_forward.2} parent=31 // pred_check
        %p1249 = pneg %p102
      $region34: #{conv_block_forward.2} parent=31 // pred_check_branch
        %1251 = sbr.rel (%p1249) target = $region36
      $region35: #{conv_block_forward.2} parent=31 // pred_region
        _
      $region36: #{conv_block_forward.2} parent=31 // pred_fallthru
        _
      // Predicated region
      $region37: #{conv_block_forward.2} parent=31 // pred_check
        %p1252 = pneg %p128
      $region38: #{conv_block_forward.2} parent=31 // pred_check_branch
        %1254 = sbr.rel (%p1252) target = $region40
      $region39: #{conv_block_forward.2} parent=31 // pred_region
        _
      $region40: #{conv_block_forward.2} parent=31 // pred_fallthru
        _
    $region32: #{conv_block_forward.2} parent=5 // pred_fallthru
      _
    %p1255 = scmp.le.s32.totalorder 2, %s11
    // Predicated region
    $region41: #{conv_block_forward.2} parent=5 // pred_check
      %p1256 = pneg %p1255
    $region42: #{conv_block_forward.2} parent=5 // pred_check_branch
      %1258 = sbr.rel (%p1256) target = $region44
    $region43: #{conv_block_forward.2} parent=5 // pred_region
      %s1259 = ssub.s32 %s11, 2
      // Predicated region
      $region45: #{conv_block_forward.2} parent=43 // pred_check
        %p1260 = pneg %p108
      $region46: #{conv_block_forward.2} parent=43 // pred_check_branch
        %1262 = sbr.rel (%p1260) target = $region48
      $region47: #{conv_block_forward.2} parent=43 // pred_region
        %p1263 = scmp.lt.s32.totalorder %s17, 1
        %s1264 = scalar_select %p1263, %s17, 1
        %s1265 = smul.addr %s1264, 3
        %s1266 = smul.addr %s1265, 8
        %s1267 = scalar_lea.vmem %s3, %s1266
      $region48: #{conv_block_forward.2} parent=43 // pred_fallthru
        _
      // Predicated region
      $region49: #{conv_block_forward.2} parent=43 // pred_check
        %p1268 = pneg %p134
      $region50: #{conv_block_forward.2} parent=43 // pred_check_branch
        %1270 = sbr.rel (%p1268) target = $region52
      $region51: #{conv_block_forward.2} parent=43 // pred_region
        %p1271 = scmp.lt.s32.totalorder %s17, 1
        %s1272 = scalar_select %p1271, %s17, 1
        %s1273 = smul.addr %s1272, 8
        %s1274 = scalar_lea.vmem %s4, %s1273
      $region52: #{conv_block_forward.2} parent=43 // pred_fallthru
        _
    $region44: #{conv_block_forward.2} parent=5 // pred_fallthru
      _
  $region6: #{conv_block_forward.2} parent=0 // loop_footer
    %s15 = sadd.s32 1, %s11
  $region7: #{conv_block_forward.2} parent=0 // loop_footer_branch
    %10 = sbr.rel target = $region3
  $region8: #{conv_block_forward.2} parent=0 // loop_exit
    _

</llo_original>
